<compile_context>
chip_gen: v7x
topology: tpu7x:2x2x1
jax: 0.10.0
libtpu: 0.0.40
codegen_flags: <defaults>
</compile_context>

<pallas_src>
import jax
import jax.numpy as jnp
from jax.experimental import pallas as pl
from jax.experimental.pallas import tpu as pltpu


def _round_up(x, m):
    return ((x + m - 1) // m) * m


def _choose_tile_rows(num_rows):
    # Large tiles amortize per-grid-step overhead; keep >= 2 steps when the
    # problem allows so megacore / v7x's two TensorCores each take half.
    target = 1024                       # 1024 rows * 128 lanes * 4 B = 512 KiB / step
    if num_rows <= 16:
        return max(8, _round_up(num_rows, 8))
    half = _round_up((num_rows + 1) // 2, 8)
    return min(target, half)


def _embedding_gather_kernel(idx_ref, tbl_ref, out_ref):
    """Packed row-gather via one-hot matmul on the MXU.

    idx_ref : (TILE_ROWS, PACK)        int32  -- PACK indices per output row
    tbl_ref : (PACK*P, PACK*D)         float  -- block-diagonal replicated table
    out_ref : (TILE_ROWS, PACK*D)      float  -- lane-dense (PACK*D == 128 when packed)
    """
    pack = idx_ref.shape[1]
    big_p = tbl_ref.shape[0]
    num_embedding = big_p // pack

    # Upper truncation only (matches the PyTorch module).
    idx = jnp.minimum(idx_ref[...], num_embedding - 1)          # (TILE_ROWS, PACK)
    rows = idx.shape[0]

    # onehot[r, j*P + p] = (idx[r, j] == p); built with `pack` lane-dense
    # compares against a column iota (pack is a tiny static int, <= 4 here).
    cols = jax.lax.broadcasted_iota(jnp.int32, (rows, big_p), 1)
    onehot = (cols == idx[:, 0:1]).astype(tbl_ref.dtype)
    for j in range(1, pack):
        onehot = onehot + (cols == (idx[:, j:j + 1] + j * num_embedding)).astype(tbl_ref.dtype)

    # Row gather as a matmul (exact: one-hot selects rows, products are 0 or x).
    out_ref[...] = jnp.dot(
        onehot, tbl_ref[...], preferred_element_type=jnp.float32
    ).astype(out_ref.dtype)


@jax.jit
def learnable_positional_embedding(emb_indices, table):
    """emb_indices: integer array (*); table: (num_embedding, D) -> (*, D)."""
    input_shape = emb_indices.shape
    num_embedding, embedding_dim = table.shape

    # Lane-dense packing factor (4 for D=32).  Falls back to 1 if D does not
    # divide 128 or D >= 128 (output block then equals the full last dim).
    if embedding_dim < 128 and 128 % embedding_dim == 0:
        pack = 128 // embedding_dim
    else:
        pack = 1

    if pack > 1:
        # Block-diagonal (pack*P, pack*D) table: slot j holds the table in
        # columns [j*D, (j+1)*D).  For P=16, D=32 this is 64x128 f32 = 32 KiB.
        eye = jnp.eye(pack, dtype=table.dtype)
        big_table = jnp.einsum("jk,pd->jpkd", eye, table).reshape(
            pack * num_embedding, pack * embedding_dim)
    else:
        big_table = table

    # Flatten indices and pad to a whole number of (tile_rows, pack) blocks.
    flat = emb_indices.reshape(-1).astype(jnp.int32)
    n = flat.shape[0]
    num_rows = -(-n // pack)
    tile_rows = _choose_tile_rows(num_rows)
    rows_pad = _round_up(num_rows, tile_rows)
    # Pad indices with 0 -> they gather table row 0; sliced off below. Keep the slice!
    flat = jnp.pad(flat, (0, rows_pad * pack - n))
    idx2d = flat.reshape(rows_pad, pack)

    out = pl.pallas_call(
        _embedding_gather_kernel,
        out_shape=jax.ShapeDtypeStruct((rows_pad, pack * embedding_dim), table.dtype),
        grid_spec=pltpu.PrefetchScalarGridSpec(
            num_scalar_prefetch=0,
            grid=(rows_pad // tile_rows,),
            in_specs=[
                pl.BlockSpec((tile_rows, pack), lambda i: (i, 0)),
                # Full table, constant block index -> fetched once by the
                # pipeline (no per-step re-DMA); tiny, so residency is cheap
                # on v5e/v6e (128 MiB VMEM) and v7x (64 MiB).
                pl.BlockSpec((pack * num_embedding, pack * embedding_dim),
                             lambda i: (0, 0)),
            ],
            out_specs=pl.BlockSpec((tile_rows, pack * embedding_dim),
                                   lambda i: (i, 0)),
        ),
        compiler_params=pltpu.CompilerParams(
            # Independent index tiles: let megacore / v7x's 2 TCs split the grid.
            dimension_semantics=("parallel",),
        ),
    )(idx2d, big_table)

    # Unpack: row r, slot j holds the embedding of flat index r*pack + j.
    out = out.reshape(rows_pad * pack, embedding_dim)[:n]
    return out.reshape(*input_shape, embedding_dim)


if __name__ == "__main__":
    # Module config (small, consistent with the constructor signature).
    num_embedding = 16
    embedding_dim = 32

    key = jax.random.PRNGKey(0)
    k_idx, k_tbl = jax.random.split(key)

    # Deterministic "weights": nn.Embedding default init is N(0, 1).
    table = jax.random.normal(k_tbl, (num_embedding, embedding_dim), dtype=jnp.float32)

    # Example indices; deliberately exceed num_embedding-1 to exercise truncation.
    x = jax.random.randint(k_idx, (2, 4, 16, 16), 0, num_embedding + 5, dtype=jnp.int32)

    out = learnable_positional_embedding(x, table)
    out = jax.block_until_ready(out)

    # Pure-JAX reference for correctness.
    ref = jnp.take(table, jnp.minimum(x, num_embedding - 1), axis=0)
    assert out.shape == (*x.shape, embedding_dim), out.shape
    assert jnp.allclose(out, ref, atol=1e-6), "mismatch vs reference gather"

    print("KERNEL_OK")
</pallas_src>

<mosaic_0001>
module attributes {stable_mosaic.version = 11 : i64} {
  func.func @_embedding_gather_kernel(%arg0: i32, %arg1: memref<256x4xi32, #tpu.memory_space<vmem>>, %arg2: memref<64x128xf32, #tpu.memory_space<vmem>>, %arg3: memref<256x128xf32, #tpu.memory_space<vmem>>) attributes {dimension_semantics = [#tpu.dimension_semantics<parallel>], iteration_bounds = array<i64: 2>, scalar_prefetch = 0 : i64, scratch_operands = 0 : i64, tpu.core_type = #tpu.core_type<tc>, window_params = [{transform_indices = @transform_0, window_bounds = array<i64: 256, 4>}, {pipeline_mode = #tpu.pipeline_mode<synchronous>, transform_indices = @transform_1, window_bounds = array<i64: 64, 128>}, {transform_indices = @transform_2, window_bounds = array<i64: 256, 128>}]} {
    %c0 = arith.constant 0 : index
    %c0_0 = arith.constant 0 : index
    %0 = vector.load %arg1[%c0, %c0_0] : memref<256x4xi32, #tpu.memory_space<vmem>>, vector<256x4xi32>
    %c15_i32 = arith.constant 15 : i32
    %1 = vector.broadcast %c15_i32 : i32 to vector<256x4xi32>
    %2 = arith.minsi %0, %1 : vector<256x4xi32>
    %3 = tpu.iota {dimensions = array<i32: 1>} : vector<256x64xi32>
    %4 = vector.extract_strided_slice %2 {offsets = [0, 0], sizes = [256, 1], strides = [1, 1]} : vector<256x4xi32> to vector<256x1xi32>
    %5 = vector.broadcast %4 : vector<256x1xi32> to vector<256x64xi32>
    %6 = arith.cmpi eq, %3, %5 : vector<256x64xi32>
    %7 = arith.extui %6 : vector<256x64xi1> to vector<256x64xi32>
    %8 = arith.sitofp %7 : vector<256x64xi32> to vector<256x64xf32>
    %9 = vector.extract_strided_slice %2 {offsets = [0, 1], sizes = [256, 1], strides = [1, 1]} : vector<256x4xi32> to vector<256x1xi32>
    %c16_i32 = arith.constant 16 : i32
    %10 = vector.broadcast %c16_i32 : i32 to vector<256x1xi32>
    %11 = arith.addi %9, %10 : vector<256x1xi32>
    %12 = vector.broadcast %11 : vector<256x1xi32> to vector<256x64xi32>
    %13 = arith.cmpi eq, %3, %12 : vector<256x64xi32>
    %14 = arith.extui %13 : vector<256x64xi1> to vector<256x64xi32>
    %15 = arith.sitofp %14 : vector<256x64xi32> to vector<256x64xf32>
    %16 = arith.addf %8, %15 : vector<256x64xf32>
    %17 = vector.extract_strided_slice %2 {offsets = [0, 2], sizes = [256, 1], strides = [1, 1]} : vector<256x4xi32> to vector<256x1xi32>
    %c32_i32 = arith.constant 32 : i32
    %18 = vector.broadcast %c32_i32 : i32 to vector<256x1xi32>
    %19 = arith.addi %17, %18 : vector<256x1xi32>
    %20 = vector.broadcast %19 : vector<256x1xi32> to vector<256x64xi32>
    %21 = arith.cmpi eq, %3, %20 : vector<256x64xi32>
    %22 = arith.extui %21 : vector<256x64xi1> to vector<256x64xi32>
    %23 = arith.sitofp %22 : vector<256x64xi32> to vector<256x64xf32>
    %24 = arith.addf %16, %23 : vector<256x64xf32>
    %25 = vector.extract_strided_slice %2 {offsets = [0, 3], sizes = [256, 1], strides = [1, 1]} : vector<256x4xi32> to vector<256x1xi32>
    %c48_i32 = arith.constant 48 : i32
    %26 = vector.broadcast %c48_i32 : i32 to vector<256x1xi32>
    %27 = arith.addi %25, %26 : vector<256x1xi32>
    %28 = vector.broadcast %27 : vector<256x1xi32> to vector<256x64xi32>
    %29 = arith.cmpi eq, %3, %28 : vector<256x64xi32>
    %30 = arith.extui %29 : vector<256x64xi1> to vector<256x64xi32>
    %31 = arith.sitofp %30 : vector<256x64xi32> to vector<256x64xf32>
    %32 = arith.addf %24, %31 : vector<256x64xf32>
    %c0_1 = arith.constant 0 : index
    %c0_2 = arith.constant 0 : index
    %33 = vector.load %arg2[%c0_1, %c0_2] : memref<64x128xf32, #tpu.memory_space<vmem>>, vector<64x128xf32>
    %cst = arith.constant dense<0.000000e+00> : vector<256x128xf32>
    %34 = tpu.matmul %32, %33, %cst {dimension_numbers = #tpu.dot_dimension_numbers<[1], [0], [0], [1], [0, 0, 1, 1], [], []>} : vector<256x64xf32>, vector<64x128xf32>, vector<256x128xf32> -> vector<256x128xf32>
    %c0_3 = arith.constant 0 : index
    %c0_4 = arith.constant 0 : index
    %35 = vector.load %arg3[%c0_3, %c0_4] : memref<256x128xf32, #tpu.memory_space<vmem>>, vector<256x128xf32>
    tpu.vector_store %arg3[%c0_3, %c0_4], %34 {strides = array<i32>} : memref<256x128xf32, #tpu.memory_space<vmem>>, vector<256x128xf32>,
    return
  }
  func.func @transform_0(%arg0: i32) -> (i32, i32) {
    %c0_i32 = arith.constant 0 : i32
    %c0_i32_0 = arith.constant 0 : i32
    return %arg0, %c0_i32 : i32, i32
  }
  func.func @transform_1(%arg0: i32) -> (i32, i32) {
    %c0_i32 = arith.constant 0 : i32
    %c0_i32_0 = arith.constant 0 : i32
    %c0_i32_1 = arith.constant 0 : i32
    return %c0_i32, %c0_i32_0 : i32, i32
  }
  func.func @transform_2(%arg0: i32) -> (i32, i32) {
    %c0_i32 = arith.constant 0 : i32
    %c0_i32_0 = arith.constant 0 : i32
    return %arg0, %c0_i32 : i32, i32
  }
}

</mosaic_0001>

<llo_original>
// kernel: learnable_positional_embedding.1
$region0: #{learnable_positional_embedding.1}
  #allocation0 [shape = 'u32[]', space=smem, size = 0x4, offset = 0x4, fixed_abs, tag = 'smem constant byte address 0x4 - core index']
  #allocation1 [shape = 'u32[144,128]{1,0:T(1,128)}', space=vmem, size = 0x12000, scoped, tag = 'internal scratch']
  %s0 = inlined_call_operand.vmem [shape: s32[512,4], index: 0, kind: input, shape index: {}]
  %s1 = inlined_call_operand.vmem [shape: f32[64,128], index: 1, kind: input, shape index: {}]
  %s2 = inlined_call_operand.vmem [shape: f32[512,128], index: 2, kind: output, shape index: {}]
  %s3 = sld [smem:[#allocation0]]
  $region41: #{learnable_positional_embedding.1} parent=0
    _
  %s5 = ssub.s32 1, %s3
  %s6 = scalar_select 0, %s5, %s3
  loop: start=0, step=1, limit=4
  $region2: #{learnable_positional_embedding.1} parent=0 // loop_pre_header
    _
  $region3: #{learnable_positional_embedding.1} parent=0 // loop_header
    %s8 = sphi 0, %s12
    %p9 = scmp.ge.s32.totalorder %s8, 4
    %s18 = sphi 0, %s20
    %s21 = sphi 0, %s18
    %s22 = sphi 0, %s21
    %s38 = sphi 0, %s22
    %s42 = sphi 0, %s42
    %s44 = sphi 0, %s42
    %s45 = sphi 0, %s44
    %s59 = sphi 0, %s45
    %s65 = sphi 0, %s67
    %s68 = sphi 0, %s65
    %s69 = sphi 0, %s68
    %s85 = sphi 0, %s69
  $region4: #{learnable_positional_embedding.1} parent=0 // loop_header_branch
    %11 = sbr.rel (%p9) target = $region8
  $region5: #{learnable_positional_embedding.1} parent=0 // loop_body
    %s13 = ssub.s32 %s8, 1
    %s14 = ssub.s32 %s8, 2
    %s15 = sadd.s32 %s8, 1
    %s16 = ssub.s32 %s8, %s15
    %p17 = scmp.eq.s32.totalorder %s16, 0
    %s19 = sadd.s32 %s18, 1
    %s20 = scalar_select %p17, %s18, %s19
    %p23 = pneg %p17
    %p24 = scmp.eq.s32.totalorder %s8, 1
    %p25 = por %p23, %p24
    %p26 = scmp.ne.s32.totalorder %s18, %s21
    %p27 = scmp.eq.s32.totalorder %s8, 0
    %p28 = por %p26, %p27
    %p29 = scmp.ne.s32.totalorder %s18, %s21
    %p30 = scmp.eq.s32.totalorder %s13, 1
    %p31 = por %p29, %p30
    %p32 = scmp.ne.s32.totalorder %s21, %s22
    %p33 = scmp.eq.s32.totalorder %s13, 0
    %p34 = por %p32, %p33
    %p35 = scmp.ne.s32.totalorder %s21, %s22
    %p36 = scmp.eq.s32.totalorder %s14, 1
    %p37 = por %p35, %p36
    %p39 = scmp.ne.s32.totalorder %s22, %s38
    %p40 = scmp.eq.s32.totalorder %s14, 0
    %p41 = por %p39, %p40
    %s43 = sadd.s32 %s42, 1
    %p46 = scmp.eq.s32.totalorder %s8, 1
    %p47 = scmp.ne.s32.totalorder %s42, %s44
    %p48 = scmp.eq.s32.totalorder %s8, 0
    %p49 = por %p47, %p48
    %p50 = scmp.ne.s32.totalorder %s42, %s44
    %p51 = scmp.eq.s32.totalorder %s13, 1
    %p52 = por %p50, %p51
    %p53 = scmp.ne.s32.totalorder %s44, %s45
    %p54 = scmp.eq.s32.totalorder %s13, 0
    %p55 = por %p53, %p54
    %p56 = scmp.ne.s32.totalorder %s44, %s45
    %p57 = scmp.eq.s32.totalorder %s14, 1
    %p58 = por %p56, %p57
    %p60 = scmp.ne.s32.totalorder %s45, %s59
    %p61 = scmp.eq.s32.totalorder %s14, 0
    %p62 = por %p60, %p61
    %s63 = ssub.s32 %s8, %s15
    %p64 = scmp.eq.s32.totalorder %s63, 0
    %s66 = sadd.s32 %s65, 1
    %s67 = scalar_select %p64, %s65, %s66
    %p70 = pneg %p64
    %p71 = scmp.eq.s32.totalorder %s8, 1
    %p72 = por %p70, %p71
    %p73 = scmp.ne.s32.totalorder %s65, %s68
    %p74 = scmp.eq.s32.totalorder %s8, 0
    %p75 = por %p73, %p74
    %p76 = scmp.ne.s32.totalorder %s65, %s68
    %p77 = scmp.eq.s32.totalorder %s13, 1
    %p78 = por %p76, %p77
    %p79 = scmp.ne.s32.totalorder %s68, %s69
    %p80 = scmp.eq.s32.totalorder %s13, 0
    %p81 = por %p79, %p80
    %p82 = scmp.ne.s32.totalorder %s68, %s69
    %p83 = scmp.eq.s32.totalorder %s14, 1
    %p84 = por %p82, %p83
    %p86 = scmp.ne.s32.totalorder %s69, %s85
    %p87 = scmp.eq.s32.totalorder %s14, 0
    %p88 = por %p86, %p87
    %p89 = scmp.le.s32.totalorder 1, %s8
    %p90 = scmp.lt.s32.totalorder %s8, 3
    %p91 = pnand %p89, %p90
    %p92 = pneg %p91
    // Predicated region
    $region9: #{learnable_positional_embedding.1} parent=5 // pred_check
      _
    $region10: #{learnable_positional_embedding.1} parent=5 // pred_check_branch
      %94 = sbr.rel (%p91) target = $region12
    $region11: #{learnable_positional_embedding.1} parent=5 // pred_region
      %s95 = ssub.s32 %s8, 1
      // Predicated region
      $region13: #{learnable_positional_embedding.1} parent=11 // pred_check
        %p96 = pneg %p55
      $region14: #{learnable_positional_embedding.1} parent=11 // pred_check_branch
        %98 = sbr.rel (%p96) target = $region16
      $region15: #{learnable_positional_embedding.1} parent=11 // pred_region
        _
      $region16: #{learnable_positional_embedding.1} parent=11 // pred_fallthru
        _
    $region12: #{learnable_positional_embedding.1} parent=5 // pred_fallthru
      _
    %p99 = scmp.lt.s32.totalorder %s8, 2
    // Predicated region
    $region17: #{learnable_positional_embedding.1} parent=5 // pred_check
      %p100 = pneg %p99
    $region18: #{learnable_positional_embedding.1} parent=5 // pred_check_branch
      %102 = sbr.rel (%p100) target = $region20
    $region19: #{learnable_positional_embedding.1} parent=5 // pred_region
      // Predicated region
      $region21: #{learnable_positional_embedding.1} parent=19 // pred_check
        %p103 = pneg %p28
      $region22: #{learnable_positional_embedding.1} parent=19 // pred_check_branch
        %105 = sbr.rel (%p103) target = $region24
      $region23: #{learnable_positional_embedding.1} parent=19 // pred_region
        %s106 = smul.u32 32, %s8
        %p107 = scmp.lt.s32.totalorder %s106, 63
        %s108 = scalar_select %p107, %s106, 63
        %s109 = smul.addr %s108, 8
        %s110 = scalar_lea.vmem %s0, %s109
        %s111 = smul.u32 32, %s8
      $region24: #{learnable_positional_embedding.1} parent=19 // pred_fallthru
        _
    $region20: #{learnable_positional_embedding.1} parent=5 // pred_fallthru
      _
    %p112 = scmp.le.s32.totalorder 1, %s8
    %p113 = scmp.lt.s32.totalorder %s8, 3
    %p114 = pnand %p112, %p113
    %p115 = pneg %p114
    // Predicated region
    $region25: #{learnable_positional_embedding.1} parent=5 // pred_check
      _
    $region26: #{learnable_positional_embedding.1} parent=5 // pred_check_branch
      %117 = sbr.rel (%p114) target = $region28
    $region27: #{learnable_positional_embedding.1} parent=5 // pred_region
      %s118 = ssub.s32 %s8, 1
      %s119 = smul.u32 32, %s13
      %p120 = scmp.lt.s32.totalorder %s119, 63
      %s121 = scalar_select %p120, %s119, 63
      %s122 = smul.addr %s121, 8
      %s123 = scalar_lea.vmem %s0, %s122
      %p124 = pneg %p34
      %p125 = pneg %p31
      %p126 = pneg %p55
      %p127 = pneg %p52
      %p128 = pneg %p81
      %p129 = pneg %p78
      %s130 = smul.u32 32, %s13
      %p131 = scmp.lt.s32.totalorder %s130, 63
      %s132 = scalar_select %p131, %s130, 63
      %s133 = smul.addr %s132, 8
      %s134 = scalar_lea.vmem %s2, %s133
      %s135 = smul.u32 32, %s13
      %p136 = scmp.lt.s32.totalorder %s135, 63
      %s137 = scalar_select %p136, %s135, 63
      %s138 = smul.addr %s137, 8
      %s139 = scalar_lea.vmem %s0, %s138
      %s140 = smul.u32 32, %s13
      %s141 = smul.u32 32, %s13
      %p142 = scmp.lt.s32.totalorder %s141, 63
      %s143 = scalar_select %p142, %s141, 63
      %s144 = smul.addr %s143, 8
      %s145 = scalar_lea.vmem %s2, %s144
      %s146 = smul.u32 32, %s13
      %v147 = vld [vmem:[%s139] sm:$0xff]
      %v148 = vld [vmem:[%s139 + $0x8] sm:$0xff]
      %v149 = vld [vmem:[%s139 + $0x10] sm:$0xff]
      %v150 = vld [vmem:[%s139 + $0x18] sm:$0xff]
      %v151 = vld [vmem:[%s139 + $0x20] sm:$0xff]
      %v152 = vld [vmem:[%s139 + $0x28] sm:$0xff]
      %v153 = vld [vmem:[%s139 + $0x30] sm:$0xff]
      %v154 = vld [vmem:[%s139 + $0x38] sm:$0xff]
      %v155 = vld [vmem:[%s139 + $0x40] sm:$0xff]
      %v156 = vld [vmem:[%s139 + $0x48] sm:$0xff]
      %v157 = vld [vmem:[%s139 + $0x50] sm:$0xff]
      %v158 = vld [vmem:[%s139 + $0x58] sm:$0xff]
      %v159 = vld [vmem:[%s139 + $0x60] sm:$0xff]
      %v160 = vld [vmem:[%s139 + $0x68] sm:$0xff]
      %v161 = vld [vmem:[%s139 + $0x70] sm:$0xff]
      %v162 = vld [vmem:[%s139 + $0x78] sm:$0xff]
      %v163 = vld [vmem:[%s139 + $0x80] sm:$0xff]
      %v164 = vld [vmem:[%s139 + $0x88] sm:$0xff]
      %v165 = vld [vmem:[%s139 + $0x90] sm:$0xff]
      %v166 = vld [vmem:[%s139 + $0x98] sm:$0xff]
      %v167 = vld [vmem:[%s139 + $0xa0] sm:$0xff]
      %v168 = vld [vmem:[%s139 + $0xa8] sm:$0xff]
      %v169 = vld [vmem:[%s139 + $0xb0] sm:$0xff]
      %v170 = vld [vmem:[%s139 + $0xb8] sm:$0xff]
      %v171 = vld [vmem:[%s139 + $0xc0] sm:$0xff]
      %v172 = vld [vmem:[%s139 + $0xc8] sm:$0xff]
      %v173 = vld [vmem:[%s139 + $0xd0] sm:$0xff]
      %v174 = vld [vmem:[%s139 + $0xd8] sm:$0xff]
      %v175 = vld [vmem:[%s139 + $0xe0] sm:$0xff]
      %v176 = vld [vmem:[%s139 + $0xe8] sm:$0xff]
      %v177 = vld [vmem:[%s139 + $0xf0] sm:$0xff]
      %v178 = vld [vmem:[%s139 + $0xf8] sm:$0xff]
      %vm179 = vcmp.lt.s32.totalorder %v147, 15
      %v180 = vsel %vm179, %v147, 15
      %vm181 = vcmp.lt.s32.totalorder %v148, 15
      %v182 = vsel %vm181, %v148, 15
      %vm183 = vcmp.lt.s32.totalorder %v149, 15
      %v184 = vsel %vm183, %v149, 15
      %vm185 = vcmp.lt.s32.totalorder %v150, 15
      %v186 = vsel %vm185, %v150, 15
      %vm187 = vcmp.lt.s32.totalorder %v151, 15
      %v188 = vsel %vm187, %v151, 15
      %vm189 = vcmp.lt.s32.totalorder %v152, 15
      %v190 = vsel %vm189, %v152, 15
      %vm191 = vcmp.lt.s32.totalorder %v153, 15
      %v192 = vsel %vm191, %v153, 15
      %vm193 = vcmp.lt.s32.totalorder %v154, 15
      %v194 = vsel %vm193, %v154, 15
      %vm195 = vcmp.lt.s32.totalorder %v155, 15
      %v196 = vsel %vm195, %v155, 15
      %vm197 = vcmp.lt.s32.totalorder %v156, 15
      %v198 = vsel %vm197, %v156, 15
      %vm199 = vcmp.lt.s32.totalorder %v157, 15
      %v200 = vsel %vm199, %v157, 15
      %vm201 = vcmp.lt.s32.totalorder %v158, 15
      %v202 = vsel %vm201, %v158, 15
      %vm203 = vcmp.lt.s32.totalorder %v159, 15
      %v204 = vsel %vm203, %v159, 15
      %vm205 = vcmp.lt.s32.totalorder %v160, 15
      %v206 = vsel %vm205, %v160, 15
      %vm207 = vcmp.lt.s32.totalorder %v161, 15
      %v208 = vsel %vm207, %v161, 15
      %vm209 = vcmp.lt.s32.totalorder %v162, 15
      %v210 = vsel %vm209, %v162, 15
      %vm211 = vcmp.lt.s32.totalorder %v163, 15
      %v212 = vsel %vm211, %v163, 15
      %vm213 = vcmp.lt.s32.totalorder %v164, 15
      %v214 = vsel %vm213, %v164, 15
      %vm215 = vcmp.lt.s32.totalorder %v165, 15
      %v216 = vsel %vm215, %v165, 15
      %vm217 = vcmp.lt.s32.totalorder %v166, 15
      %v218 = vsel %vm217, %v166, 15
      %vm219 = vcmp.lt.s32.totalorder %v167, 15
      %v220 = vsel %vm219, %v167, 15
      %vm221 = vcmp.lt.s32.totalorder %v168, 15
      %v222 = vsel %vm221, %v168, 15
      %vm223 = vcmp.lt.s32.totalorder %v169, 15
      %v224 = vsel %vm223, %v169, 15
      %vm225 = vcmp.lt.s32.totalorder %v170, 15
      %v226 = vsel %vm225, %v170, 15
      %vm227 = vcmp.lt.s32.totalorder %v171, 15
      %v228 = vsel %vm227, %v171, 15
      %vm229 = vcmp.lt.s32.totalorder %v172, 15
      %v230 = vsel %vm229, %v172, 15
      %vm231 = vcmp.lt.s32.totalorder %v173, 15
      %v232 = vsel %vm231, %v173, 15
      %vm233 = vcmp.lt.s32.totalorder %v174, 15
      %v234 = vsel %vm233, %v174, 15
      %vm235 = vcmp.lt.s32.totalorder %v175, 15
      %v236 = vsel %vm235, %v175, 15
      %vm237 = vcmp.lt.s32.totalorder %v176, 15
      %v238 = vsel %vm237, %v176, 15
      %vm239 = vcmp.lt.s32.totalorder %v177, 15
      %v240 = vsel %vm239, %v177, 15
      %vm241 = vcmp.lt.s32.totalorder %v178, 15
      %v242 = vsel %vm241, %v178, 15
      %v243 = vlaneseq
      %v244 = vand.u32 %v243, 127
      %245 = vset.pattern.permute.xlu0 0
      %246 = vperm.xlu0 %245, %v180
      %v247 = vpop.permute.xlu0 %246
      %248 = vset.pattern.permute.xlu0 0
      %249 = vperm.xlu0 %248, %v182
      %v250 = vpop.permute.xlu0 %249
      %251 = vset.pattern.permute.xlu0 0
      %252 = vperm.xlu0 %251, %v184
      %v253 = vpop.permute.xlu0 %252
      %254 = vset.pattern.permute.xlu0 0
      %255 = vperm.xlu0 %254, %v186
      %v256 = vpop.permute.xlu0 %255
      %257 = vset.pattern.permute.xlu0 0
      %258 = vperm.xlu0 %257, %v188
      %v259 = vpop.permute.xlu0 %258
      %260 = vset.pattern.permute.xlu0 0
      %261 = vperm.xlu0 %260, %v190
      %v262 = vpop.permute.xlu0 %261
      %263 = vset.pattern.permute.xlu0 0
      %264 = vperm.xlu0 %263, %v192
      %v265 = vpop.permute.xlu0 %264
      %266 = vset.pattern.permute.xlu0 0
      %267 = vperm.xlu0 %266, %v194
      %v268 = vpop.permute.xlu0 %267
      %269 = vset.pattern.permute.xlu0 0
      %270 = vperm.xlu0 %269, %v196
      %v271 = vpop.permute.xlu0 %270
      %272 = vset.pattern.permute.xlu0 0
      %273 = vperm.xlu0 %272, %v198
      %v274 = vpop.permute.xlu0 %273
      %275 = vset.pattern.permute.xlu0 0
      %276 = vperm.xlu0 %275, %v200
      %v277 = vpop.permute.xlu0 %276
      %278 = vset.pattern.permute.xlu0 0
      %279 = vperm.xlu0 %278, %v202
      %v280 = vpop.permute.xlu0 %279
      %281 = vset.pattern.permute.xlu0 0
      %282 = vperm.xlu0 %281, %v204
      %v283 = vpop.permute.xlu0 %282
      %284 = vset.pattern.permute.xlu0 0
      %285 = vperm.xlu0 %284, %v206
      %v286 = vpop.permute.xlu0 %285
      %287 = vset.pattern.permute.xlu0 0
      %288 = vperm.xlu0 %287, %v208
      %v289 = vpop.permute.xlu0 %288
      %290 = vset.pattern.permute.xlu0 0
      %291 = vperm.xlu0 %290, %v210
      %v292 = vpop.permute.xlu0 %291
      %293 = vset.pattern.permute.xlu0 0
      %294 = vperm.xlu0 %293, %v212
      %v295 = vpop.permute.xlu0 %294
      %296 = vset.pattern.permute.xlu0 0
      %297 = vperm.xlu0 %296, %v214
      %v298 = vpop.permute.xlu0 %297
      %299 = vset.pattern.permute.xlu0 0
      %300 = vperm.xlu0 %299, %v216
      %v301 = vpop.permute.xlu0 %300
      %302 = vset.pattern.permute.xlu0 0
      %303 = vperm.xlu0 %302, %v218
      %v304 = vpop.permute.xlu0 %303
      %305 = vset.pattern.permute.xlu0 0
      %306 = vperm.xlu0 %305, %v220
      %v307 = vpop.permute.xlu0 %306
      %308 = vset.pattern.permute.xlu0 0
      %309 = vperm.xlu0 %308, %v222
      %v310 = vpop.permute.xlu0 %309
      %311 = vset.pattern.permute.xlu0 0
      %312 = vperm.xlu0 %311, %v224
      %v313 = vpop.permute.xlu0 %312
      %314 = vset.pattern.permute.xlu0 0
      %315 = vperm.xlu0 %314, %v226
      %v316 = vpop.permute.xlu0 %315
      %317 = vset.pattern.permute.xlu0 0
      %318 = vperm.xlu0 %317, %v228
      %v319 = vpop.permute.xlu0 %318
      %320 = vset.pattern.permute.xlu0 0
      %321 = vperm.xlu0 %320, %v230
      %v322 = vpop.permute.xlu0 %321
      %323 = vset.pattern.permute.xlu0 0
      %324 = vperm.xlu0 %323, %v232
      %v325 = vpop.permute.xlu0 %324
      %326 = vset.pattern.permute.xlu0 0
      %327 = vperm.xlu0 %326, %v234
      %v328 = vpop.permute.xlu0 %327
      %329 = vset.pattern.permute.xlu0 0
      %330 = vperm.xlu0 %329, %v236
      %v331 = vpop.permute.xlu0 %330
      %332 = vset.pattern.permute.xlu0 0
      %333 = vperm.xlu0 %332, %v238
      %v334 = vpop.permute.xlu0 %333
      %335 = vset.pattern.permute.xlu0 0
      %336 = vperm.xlu0 %335, %v240
      %v337 = vpop.permute.xlu0 %336
      %338 = vset.pattern.permute.xlu0 0
      %339 = vperm.xlu0 %338, %v242
      %v340 = vpop.permute.xlu0 %339
      %vm341 = vcmp.eq.s32.totalorder %v244, %v247
      %vm342 = vcmp.eq.s32.totalorder %v244, %v250
      %vm343 = vcmp.eq.s32.totalorder %v244, %v253
      %vm344 = vcmp.eq.s32.totalorder %v244, %v256
      %vm345 = vcmp.eq.s32.totalorder %v244, %v259
      %vm346 = vcmp.eq.s32.totalorder %v244, %v262
      %vm347 = vcmp.eq.s32.totalorder %v244, %v265
      %vm348 = vcmp.eq.s32.totalorder %v244, %v268
      %vm349 = vcmp.eq.s32.totalorder %v244, %v271
      %vm350 = vcmp.eq.s32.totalorder %v244, %v274
      %vm351 = vcmp.eq.s32.totalorder %v244, %v277
      %vm352 = vcmp.eq.s32.totalorder %v244, %v280
      %vm353 = vcmp.eq.s32.totalorder %v244, %v283
      %vm354 = vcmp.eq.s32.totalorder %v244, %v286
      %vm355 = vcmp.eq.s32.totalorder %v244, %v289
      %vm356 = vcmp.eq.s32.totalorder %v244, %v292
      %vm357 = vcmp.eq.s32.totalorder %v244, %v295
      %vm358 = vcmp.eq.s32.totalorder %v244, %v298
      %vm359 = vcmp.eq.s32.totalorder %v244, %v301
      %vm360 = vcmp.eq.s32.totalorder %v244, %v304
      %vm361 = vcmp.eq.s32.totalorder %v244, %v307
      %vm362 = vcmp.eq.s32.totalorder %v244, %v310
      %vm363 = vcmp.eq.s32.totalorder %v244, %v313
      %vm364 = vcmp.eq.s32.totalorder %v244, %v316
      %vm365 = vcmp.eq.s32.totalorder %v244, %v319
      %vm366 = vcmp.eq.s32.totalorder %v244, %v322
      %vm367 = vcmp.eq.s32.totalorder %v244, %v325
      %vm368 = vcmp.eq.s32.totalorder %v244, %v328
      %vm369 = vcmp.eq.s32.totalorder %v244, %v331
      %vm370 = vcmp.eq.s32.totalorder %v244, %v334
      %vm371 = vcmp.eq.s32.totalorder %v244, %v337
      %vm372 = vcmp.eq.s32.totalorder %v244, %v340
      %v373 = vsel %vm341, 1, 0
      %v374 = vsel %vm342, 1, 0
      %v375 = vsel %vm343, 1, 0
      %v376 = vsel %vm344, 1, 0
      %v377 = vsel %vm345, 1, 0
      %v378 = vsel %vm346, 1, 0
      %v379 = vsel %vm347, 1, 0
      %v380 = vsel %vm348, 1, 0
      %v381 = vsel %vm349, 1, 0
      %v382 = vsel %vm350, 1, 0
      %v383 = vsel %vm351, 1, 0
      %v384 = vsel %vm352, 1, 0
      %v385 = vsel %vm353, 1, 0
      %v386 = vsel %vm354, 1, 0
      %v387 = vsel %vm355, 1, 0
      %v388 = vsel %vm356, 1, 0
      %v389 = vsel %vm357, 1, 0
      %v390 = vsel %vm358, 1, 0
      %v391 = vsel %vm359, 1, 0
      %v392 = vsel %vm360, 1, 0
      %v393 = vsel %vm361, 1, 0
      %v394 = vsel %vm362, 1, 0
      %v395 = vsel %vm363, 1, 0
      %v396 = vsel %vm364, 1, 0
      %v397 = vsel %vm365, 1, 0
      %v398 = vsel %vm366, 1, 0
      %v399 = vsel %vm367, 1, 0
      %v400 = vsel %vm368, 1, 0
      %v401 = vsel %vm369, 1, 0
      %v402 = vsel %vm370, 1, 0
      %v403 = vsel %vm371, 1, 0
      %v404 = vsel %vm372, 1, 0
      %v405 = vcvt.s32.f32 %v373
      %v406 = vcvt.s32.f32 %v374
      %v407 = vcvt.s32.f32 %v375
      %v408 = vcvt.s32.f32 %v376
      %v409 = vcvt.s32.f32 %v377
      %v410 = vcvt.s32.f32 %v378
      %v411 = vcvt.s32.f32 %v379
      %v412 = vcvt.s32.f32 %v380
      %v413 = vcvt.s32.f32 %v381
      %v414 = vcvt.s32.f32 %v382
      %v415 = vcvt.s32.f32 %v383
      %v416 = vcvt.s32.f32 %v384
      %v417 = vcvt.s32.f32 %v385
      %v418 = vcvt.s32.f32 %v386
      %v419 = vcvt.s32.f32 %v387
      %v420 = vcvt.s32.f32 %v388
      %v421 = vcvt.s32.f32 %v389
      %v422 = vcvt.s32.f32 %v390
      %v423 = vcvt.s32.f32 %v391
      %v424 = vcvt.s32.f32 %v392
      %v425 = vcvt.s32.f32 %v393
      %v426 = vcvt.s32.f32 %v394
      %v427 = vcvt.s32.f32 %v395
      %v428 = vcvt.s32.f32 %v396
      %v429 = vcvt.s32.f32 %v397
      %v430 = vcvt.s32.f32 %v398
      %v431 = vcvt.s32.f32 %v399
      %v432 = vcvt.s32.f32 %v400
      %v433 = vcvt.s32.f32 %v401
      %v434 = vcvt.s32.f32 %v402
      %v435 = vcvt.s32.f32 %v403
      %v436 = vcvt.s32.f32 %v404
      %v437 = vadd.s32 %v180, 16
      %v438 = vadd.s32 %v182, 16
      %v439 = vadd.s32 %v184, 16
      %v440 = vadd.s32 %v186, 16
      %v441 = vadd.s32 %v188, 16
      %v442 = vadd.s32 %v190, 16
      %v443 = vadd.s32 %v192, 16
      %v444 = vadd.s32 %v194, 16
      %v445 = vadd.s32 %v196, 16
      %v446 = vadd.s32 %v198, 16
      %v447 = vadd.s32 %v200, 16
      %v448 = vadd.s32 %v202, 16
      %v449 = vadd.s32 %v204, 16
      %v450 = vadd.s32 %v206, 16
      %v451 = vadd.s32 %v208, 16
      %v452 = vadd.s32 %v210, 16
      %v453 = vadd.s32 %v212, 16
      %v454 = vadd.s32 %v214, 16
      %v455 = vadd.s32 %v216, 16
      %v456 = vadd.s32 %v218, 16
      %v457 = vadd.s32 %v220, 16
      %v458 = vadd.s32 %v222, 16
      %v459 = vadd.s32 %v224, 16
      %v460 = vadd.s32 %v226, 16
      %v461 = vadd.s32 %v228, 16
      %v462 = vadd.s32 %v230, 16
      %v463 = vadd.s32 %v232, 16
      %v464 = vadd.s32 %v234, 16
      %v465 = vadd.s32 %v236, 16
      %v466 = vadd.s32 %v238, 16
      %v467 = vadd.s32 %v240, 16
      %v468 = vadd.s32 %v242, 16
      %469 = vset.pattern.permute.xlu0 1
      %470 = vperm.xlu0 %469, %v437
      %v471 = vpop.permute.xlu0 %470
      %472 = vset.pattern.permute.xlu0 1
      %473 = vperm.xlu0 %472, %v438
      %v474 = vpop.permute.xlu0 %473
      %475 = vset.pattern.permute.xlu0 1
      %476 = vperm.xlu0 %475, %v439
      %v477 = vpop.permute.xlu0 %476
      %478 = vset.pattern.permute.xlu0 1
      %479 = vperm.xlu0 %478, %v440
      %v480 = vpop.permute.xlu0 %479
      %481 = vset.pattern.permute.xlu0 1
      %482 = vperm.xlu0 %481, %v441
      %v483 = vpop.permute.xlu0 %482
      %484 = vset.pattern.permute.xlu0 1
      %485 = vperm.xlu0 %484, %v442
      %v486 = vpop.permute.xlu0 %485
      %487 = vset.pattern.permute.xlu0 1
      %488 = vperm.xlu0 %487, %v443
      %v489 = vpop.permute.xlu0 %488
      %490 = vset.pattern.permute.xlu0 1
      %491 = vperm.xlu0 %490, %v444
      %v492 = vpop.permute.xlu0 %491
      %493 = vset.pattern.permute.xlu0 1
      %494 = vperm.xlu0 %493, %v445
      %v495 = vpop.permute.xlu0 %494
      %496 = vset.pattern.permute.xlu0 1
      %497 = vperm.xlu0 %496, %v446
      %v498 = vpop.permute.xlu0 %497
      %499 = vset.pattern.permute.xlu0 1
      %500 = vperm.xlu0 %499, %v447
      %v501 = vpop.permute.xlu0 %500
      %502 = vset.pattern.permute.xlu0 1
      %503 = vperm.xlu0 %502, %v448
      %v504 = vpop.permute.xlu0 %503
      %505 = vset.pattern.permute.xlu0 1
      %506 = vperm.xlu0 %505, %v449
      %v507 = vpop.permute.xlu0 %506
      %508 = vset.pattern.permute.xlu0 1
      %509 = vperm.xlu0 %508, %v450
      %v510 = vpop.permute.xlu0 %509
      %511 = vset.pattern.permute.xlu0 1
      %512 = vperm.xlu0 %511, %v451
      %v513 = vpop.permute.xlu0 %512
      %514 = vset.pattern.permute.xlu0 1
      %515 = vperm.xlu0 %514, %v452
      %v516 = vpop.permute.xlu0 %515
      %517 = vset.pattern.permute.xlu0 1
      %518 = vperm.xlu0 %517, %v453
      %v519 = vpop.permute.xlu0 %518
      %520 = vset.pattern.permute.xlu0 1
      %521 = vperm.xlu0 %520, %v454
      %v522 = vpop.permute.xlu0 %521
      %523 = vset.pattern.permute.xlu0 1
      %524 = vperm.xlu0 %523, %v455
      %v525 = vpop.permute.xlu0 %524
      %526 = vset.pattern.permute.xlu0 1
      %527 = vperm.xlu0 %526, %v456
      %v528 = vpop.permute.xlu0 %527
      %529 = vset.pattern.permute.xlu0 1
      %530 = vperm.xlu0 %529, %v457
      %v531 = vpop.permute.xlu0 %530
      %532 = vset.pattern.permute.xlu0 1
      %533 = vperm.xlu0 %532, %v458
      %v534 = vpop.permute.xlu0 %533
      %535 = vset.pattern.permute.xlu0 1
      %536 = vperm.xlu0 %535, %v459
      %v537 = vpop.permute.xlu0 %536
      %538 = vset.pattern.permute.xlu0 1
      %539 = vperm.xlu0 %538, %v460
      %v540 = vpop.permute.xlu0 %539
      %541 = vset.pattern.permute.xlu0 1
      %542 = vperm.xlu0 %541, %v461
      %v543 = vpop.permute.xlu0 %542
      %544 = vset.pattern.permute.xlu0 1
      %545 = vperm.xlu0 %544, %v462
      %v546 = vpop.permute.xlu0 %545
      %547 = vset.pattern.permute.xlu0 1
      %548 = vperm.xlu0 %547, %v463
      %v549 = vpop.permute.xlu0 %548
      %550 = vset.pattern.permute.xlu0 1
      %551 = vperm.xlu0 %550, %v464
      %v552 = vpop.permute.xlu0 %551
      %553 = vset.pattern.permute.xlu0 1
      %554 = vperm.xlu0 %553, %v465
      %v555 = vpop.permute.xlu0 %554
      %556 = vset.pattern.permute.xlu0 1
      %557 = vperm.xlu0 %556, %v466
      %v558 = vpop.permute.xlu0 %557
      %559 = vset.pattern.permute.xlu0 1
      %560 = vperm.xlu0 %559, %v467
      %v561 = vpop.permute.xlu0 %560
      %562 = vset.pattern.permute.xlu0 1
      %563 = vperm.xlu0 %562, %v468
      %v564 = vpop.permute.xlu0 %563
      %vm565 = vcmp.eq.s32.totalorder %v244, %v471
      %vm566 = vcmp.eq.s32.totalorder %v244, %v474
      %vm567 = vcmp.eq.s32.totalorder %v244, %v477
      %vm568 = vcmp.eq.s32.totalorder %v244, %v480
      %vm569 = vcmp.eq.s32.totalorder %v244, %v483
      %vm570 = vcmp.eq.s32.totalorder %v244, %v486
      %vm571 = vcmp.eq.s32.totalorder %v244, %v489
      %vm572 = vcmp.eq.s32.totalorder %v244, %v492
      %vm573 = vcmp.eq.s32.totalorder %v244, %v495
      %vm574 = vcmp.eq.s32.totalorder %v244, %v498
      %vm575 = vcmp.eq.s32.totalorder %v244, %v501
      %vm576 = vcmp.eq.s32.totalorder %v244, %v504
      %vm577 = vcmp.eq.s32.totalorder %v244, %v507
      %vm578 = vcmp.eq.s32.totalorder %v244, %v510
      %vm579 = vcmp.eq.s32.totalorder %v244, %v513
      %vm580 = vcmp.eq.s32.totalorder %v244, %v516
      %vm581 = vcmp.eq.s32.totalorder %v244, %v519
      %vm582 = vcmp.eq.s32.totalorder %v244, %v522
      %vm583 = vcmp.eq.s32.totalorder %v244, %v525
      %vm584 = vcmp.eq.s32.totalorder %v244, %v528
      %vm585 = vcmp.eq.s32.totalorder %v244, %v531
      %vm586 = vcmp.eq.s32.totalorder %v244, %v534
      %vm587 = vcmp.eq.s32.totalorder %v244, %v537
      %vm588 = vcmp.eq.s32.totalorder %v244, %v540
      %vm589 = vcmp.eq.s32.totalorder %v244, %v543
      %vm590 = vcmp.eq.s32.totalorder %v244, %v546
      %vm591 = vcmp.eq.s32.totalorder %v244, %v549
      %vm592 = vcmp.eq.s32.totalorder %v244, %v552
      %vm593 = vcmp.eq.s32.totalorder %v244, %v555
      %vm594 = vcmp.eq.s32.totalorder %v244, %v558
      %vm595 = vcmp.eq.s32.totalorder %v244, %v561
      %vm596 = vcmp.eq.s32.totalorder %v244, %v564
      %v597 = vsel %vm565, 1, 0
      %v598 = vsel %vm566, 1, 0
      %v599 = vsel %vm567, 1, 0
      %v600 = vsel %vm568, 1, 0
      %v601 = vsel %vm569, 1, 0
      %v602 = vsel %vm570, 1, 0
      %v603 = vsel %vm571, 1, 0
      %v604 = vsel %vm572, 1, 0
      %v605 = vsel %vm573, 1, 0
      %v606 = vsel %vm574, 1, 0
      %v607 = vsel %vm575, 1, 0
      %v608 = vsel %vm576, 1, 0
      %v609 = vsel %vm577, 1, 0
      %v610 = vsel %vm578, 1, 0
      %v611 = vsel %vm579, 1, 0
      %v612 = vsel %vm580, 1, 0
      %v613 = vsel %vm581, 1, 0
      %v614 = vsel %vm582, 1, 0
      %v615 = vsel %vm583, 1, 0
      %v616 = vsel %vm584, 1, 0
      %v617 = vsel %vm585, 1, 0
      %v618 = vsel %vm586, 1, 0
      %v619 = vsel %vm587, 1, 0
      %v620 = vsel %vm588, 1, 0
      %v621 = vsel %vm589, 1, 0
      %v622 = vsel %vm590, 1, 0
      %v623 = vsel %vm591, 1, 0
      %v624 = vsel %vm592, 1, 0
      %v625 = vsel %vm593, 1, 0
      %v626 = vsel %vm594, 1, 0
      %v627 = vsel %vm595, 1, 0
      %v628 = vsel %vm596, 1, 0
      %v629 = vcvt.s32.f32 %v597
      %v630 = vcvt.s32.f32 %v598
      %v631 = vcvt.s32.f32 %v599
      %v632 = vcvt.s32.f32 %v600
      %v633 = vcvt.s32.f32 %v601
      %v634 = vcvt.s32.f32 %v602
      %v635 = vcvt.s32.f32 %v603
      %v636 = vcvt.s32.f32 %v604
      %v637 = vcvt.s32.f32 %v605
      %v638 = vcvt.s32.f32 %v606
      %v639 = vcvt.s32.f32 %v607
      %v640 = vcvt.s32.f32 %v608
      %v641 = vcvt.s32.f32 %v609
      %v642 = vcvt.s32.f32 %v610
      %v643 = vcvt.s32.f32 %v611
      %v644 = vcvt.s32.f32 %v612
      %v645 = vcvt.s32.f32 %v613
      %v646 = vcvt.s32.f32 %v614
      %v647 = vcvt.s32.f32 %v615
      %v648 = vcvt.s32.f32 %v616
      %v649 = vcvt.s32.f32 %v617
      %v650 = vcvt.s32.f32 %v618
      %v651 = vcvt.s32.f32 %v619
      %v652 = vcvt.s32.f32 %v620
      %v653 = vcvt.s32.f32 %v621
      %v654 = vcvt.s32.f32 %v622
      %v655 = vcvt.s32.f32 %v623
      %v656 = vcvt.s32.f32 %v624
      %v657 = vcvt.s32.f32 %v625
      %v658 = vcvt.s32.f32 %v626
      %v659 = vcvt.s32.f32 %v627
      %v660 = vcvt.s32.f32 %v628
      %v661 = vadd.f32 %v405, %v629
      %v662 = vadd.f32 %v406, %v630
      %v663 = vadd.f32 %v407, %v631
      %v664 = vadd.f32 %v408, %v632
      %v665 = vadd.f32 %v409, %v633
      %v666 = vadd.f32 %v410, %v634
      %v667 = vadd.f32 %v411, %v635
      %v668 = vadd.f32 %v412, %v636
      %v669 = vadd.f32 %v413, %v637
      %v670 = vadd.f32 %v414, %v638
      %v671 = vadd.f32 %v415, %v639
      %v672 = vadd.f32 %v416, %v640
      %v673 = vadd.f32 %v417, %v641
      %v674 = vadd.f32 %v418, %v642
      %v675 = vadd.f32 %v419, %v643
      %v676 = vadd.f32 %v420, %v644
      %v677 = vadd.f32 %v421, %v645
      %v678 = vadd.f32 %v422, %v646
      %v679 = vadd.f32 %v423, %v647
      %v680 = vadd.f32 %v424, %v648
      %v681 = vadd.f32 %v425, %v649
      %v682 = vadd.f32 %v426, %v650
      %v683 = vadd.f32 %v427, %v651
      %v684 = vadd.f32 %v428, %v652
      %v685 = vadd.f32 %v429, %v653
      %v686 = vadd.f32 %v430, %v654
      %v687 = vadd.f32 %v431, %v655
      %v688 = vadd.f32 %v432, %v656
      %v689 = vadd.f32 %v433, %v657
      %v690 = vadd.f32 %v434, %v658
      %v691 = vadd.f32 %v435, %v659
      %v692 = vadd.f32 %v436, %v660
      %v693 = vadd.s32 %v180, 32
      %v694 = vadd.s32 %v182, 32
      %v695 = vadd.s32 %v184, 32
      %v696 = vadd.s32 %v186, 32
      %v697 = vadd.s32 %v188, 32
      %v698 = vadd.s32 %v190, 32
      %v699 = vadd.s32 %v192, 32
      %v700 = vadd.s32 %v194, 32
      %v701 = vadd.s32 %v196, 32
      %v702 = vadd.s32 %v198, 32
      %v703 = vadd.s32 %v200, 32
      %v704 = vadd.s32 %v202, 32
      %v705 = vadd.s32 %v204, 32
      %v706 = vadd.s32 %v206, 32
      %v707 = vadd.s32 %v208, 32
      %v708 = vadd.s32 %v210, 32
      %v709 = vadd.s32 %v212, 32
      %v710 = vadd.s32 %v214, 32
      %v711 = vadd.s32 %v216, 32
      %v712 = vadd.s32 %v218, 32
      %v713 = vadd.s32 %v220, 32
      %v714 = vadd.s32 %v222, 32
      %v715 = vadd.s32 %v224, 32
      %v716 = vadd.s32 %v226, 32
      %v717 = vadd.s32 %v228, 32
      %v718 = vadd.s32 %v230, 32
      %v719 = vadd.s32 %v232, 32
      %v720 = vadd.s32 %v234, 32
      %v721 = vadd.s32 %v236, 32
      %v722 = vadd.s32 %v238, 32
      %v723 = vadd.s32 %v240, 32
      %v724 = vadd.s32 %v242, 32
      %725 = vset.pattern.permute.xlu0 2
      %726 = vperm.xlu0 %725, %v693
      %v727 = vpop.permute.xlu0 %726
      %728 = vset.pattern.permute.xlu0 2
      %729 = vperm.xlu0 %728, %v694
      %v730 = vpop.permute.xlu0 %729
      %731 = vset.pattern.permute.xlu0 2
      %732 = vperm.xlu0 %731, %v695
      %v733 = vpop.permute.xlu0 %732
      %734 = vset.pattern.permute.xlu0 2
      %735 = vperm.xlu0 %734, %v696
      %v736 = vpop.permute.xlu0 %735
      %737 = vset.pattern.permute.xlu0 2
      %738 = vperm.xlu0 %737, %v697
      %v739 = vpop.permute.xlu0 %738
      %740 = vset.pattern.permute.xlu0 2
      %741 = vperm.xlu0 %740, %v698
      %v742 = vpop.permute.xlu0 %741
      %743 = vset.pattern.permute.xlu0 2
      %744 = vperm.xlu0 %743, %v699
      %v745 = vpop.permute.xlu0 %744
      %746 = vset.pattern.permute.xlu0 2
      %747 = vperm.xlu0 %746, %v700
      %v748 = vpop.permute.xlu0 %747
      %749 = vset.pattern.permute.xlu0 2
      %750 = vperm.xlu0 %749, %v701
      %v751 = vpop.permute.xlu0 %750
      %752 = vset.pattern.permute.xlu0 2
      %753 = vperm.xlu0 %752, %v702
      %v754 = vpop.permute.xlu0 %753
      %755 = vset.pattern.permute.xlu0 2
      %756 = vperm.xlu0 %755, %v703
      %v757 = vpop.permute.xlu0 %756
      %758 = vset.pattern.permute.xlu0 2
      %759 = vperm.xlu0 %758, %v704
      %v760 = vpop.permute.xlu0 %759
      %761 = vset.pattern.permute.xlu0 2
      %762 = vperm.xlu0 %761, %v705
      %v763 = vpop.permute.xlu0 %762
      %764 = vset.pattern.permute.xlu0 2
      %765 = vperm.xlu0 %764, %v706
      %v766 = vpop.permute.xlu0 %765
      %767 = vset.pattern.permute.xlu0 2
      %768 = vperm.xlu0 %767, %v707
      %v769 = vpop.permute.xlu0 %768
      %770 = vset.pattern.permute.xlu0 2
      %771 = vperm.xlu0 %770, %v708
      %v772 = vpop.permute.xlu0 %771
      %773 = vset.pattern.permute.xlu0 2
      %774 = vperm.xlu0 %773, %v709
      %v775 = vpop.permute.xlu0 %774
      %776 = vset.pattern.permute.xlu0 2
      %777 = vperm.xlu0 %776, %v710
      %v778 = vpop.permute.xlu0 %777
      %779 = vset.pattern.permute.xlu0 2
      %780 = vperm.xlu0 %779, %v711
      %v781 = vpop.permute.xlu0 %780
      %782 = vset.pattern.permute.xlu0 2
      %783 = vperm.xlu0 %782, %v712
      %v784 = vpop.permute.xlu0 %783
      %785 = vset.pattern.permute.xlu0 2
      %786 = vperm.xlu0 %785, %v713
      %v787 = vpop.permute.xlu0 %786
      %788 = vset.pattern.permute.xlu0 2
      %789 = vperm.xlu0 %788, %v714
      %v790 = vpop.permute.xlu0 %789
      %791 = vset.pattern.permute.xlu0 2
      %792 = vperm.xlu0 %791, %v715
      %v793 = vpop.permute.xlu0 %792
      %794 = vset.pattern.permute.xlu0 2
      %795 = vperm.xlu0 %794, %v716
      %v796 = vpop.permute.xlu0 %795
      %797 = vset.pattern.permute.xlu0 2
      %798 = vperm.xlu0 %797, %v717
      %v799 = vpop.permute.xlu0 %798
      %800 = vset.pattern.permute.xlu0 2
      %801 = vperm.xlu0 %800, %v718
      %v802 = vpop.permute.xlu0 %801
      %803 = vset.pattern.permute.xlu0 2
      %804 = vperm.xlu0 %803, %v719
      %v805 = vpop.permute.xlu0 %804
      %806 = vset.pattern.permute.xlu0 2
      %807 = vperm.xlu0 %806, %v720
      %v808 = vpop.permute.xlu0 %807
      %809 = vset.pattern.permute.xlu0 2
      %810 = vperm.xlu0 %809, %v721
      %v811 = vpop.permute.xlu0 %810
      %812 = vset.pattern.permute.xlu0 2
      %813 = vperm.xlu0 %812, %v722
      %v814 = vpop.permute.xlu0 %813
      %815 = vset.pattern.permute.xlu0 2
      %816 = vperm.xlu0 %815, %v723
      %v817 = vpop.permute.xlu0 %816
      %818 = vset.pattern.permute.xlu0 2
      %819 = vperm.xlu0 %818, %v724
      %v820 = vpop.permute.xlu0 %819
      %vm821 = vcmp.eq.s32.totalorder %v244, %v727
      %vm822 = vcmp.eq.s32.totalorder %v244, %v730
      %vm823 = vcmp.eq.s32.totalorder %v244, %v733
      %vm824 = vcmp.eq.s32.totalorder %v244, %v736
      %vm825 = vcmp.eq.s32.totalorder %v244, %v739
      %vm826 = vcmp.eq.s32.totalorder %v244, %v742
      %vm827 = vcmp.eq.s32.totalorder %v244, %v745
      %vm828 = vcmp.eq.s32.totalorder %v244, %v748
      %vm829 = vcmp.eq.s32.totalorder %v244, %v751
      %vm830 = vcmp.eq.s32.totalorder %v244, %v754
      %vm831 = vcmp.eq.s32.totalorder %v244, %v757
      %vm832 = vcmp.eq.s32.totalorder %v244, %v760
      %vm833 = vcmp.eq.s32.totalorder %v244, %v763
      %vm834 = vcmp.eq.s32.totalorder %v244, %v766
      %vm835 = vcmp.eq.s32.totalorder %v244, %v769
      %vm836 = vcmp.eq.s32.totalorder %v244, %v772
      %vm837 = vcmp.eq.s32.totalorder %v244, %v775
      %vm838 = vcmp.eq.s32.totalorder %v244, %v778
      %vm839 = vcmp.eq.s32.totalorder %v244, %v781
      %vm840 = vcmp.eq.s32.totalorder %v244, %v784
      %vm841 = vcmp.eq.s32.totalorder %v244, %v787
      %vm842 = vcmp.eq.s32.totalorder %v244, %v790
      %vm843 = vcmp.eq.s32.totalorder %v244, %v793
      %vm844 = vcmp.eq.s32.totalorder %v244, %v796
      %vm845 = vcmp.eq.s32.totalorder %v244, %v799
      %vm846 = vcmp.eq.s32.totalorder %v244, %v802
      %vm847 = vcmp.eq.s32.totalorder %v244, %v805
      %vm848 = vcmp.eq.s32.totalorder %v244, %v808
      %vm849 = vcmp.eq.s32.totalorder %v244, %v811
      %vm850 = vcmp.eq.s32.totalorder %v244, %v814
      %vm851 = vcmp.eq.s32.totalorder %v244, %v817
      %vm852 = vcmp.eq.s32.totalorder %v244, %v820
      %v853 = vsel %vm821, 1, 0
      %v854 = vsel %vm822, 1, 0
      %v855 = vsel %vm823, 1, 0
      %v856 = vsel %vm824, 1, 0
      %v857 = vsel %vm825, 1, 0
      %v858 = vsel %vm826, 1, 0
      %v859 = vsel %vm827, 1, 0
      %v860 = vsel %vm828, 1, 0
      %v861 = vsel %vm829, 1, 0
      %v862 = vsel %vm830, 1, 0
      %v863 = vsel %vm831, 1, 0
      %v864 = vsel %vm832, 1, 0
      %v865 = vsel %vm833, 1, 0
      %v866 = vsel %vm834, 1, 0
      %v867 = vsel %vm835, 1, 0
      %v868 = vsel %vm836, 1, 0
      %v869 = vsel %vm837, 1, 0
      %v870 = vsel %vm838, 1, 0
      %v871 = vsel %vm839, 1, 0
      %v872 = vsel %vm840, 1, 0
      %v873 = vsel %vm841, 1, 0
      %v874 = vsel %vm842, 1, 0
      %v875 = vsel %vm843, 1, 0
      %v876 = vsel %vm844, 1, 0
      %v877 = vsel %vm845, 1, 0
      %v878 = vsel %vm846, 1, 0
      %v879 = vsel %vm847, 1, 0
      %v880 = vsel %vm848, 1, 0
      %v881 = vsel %vm849, 1, 0
      %v882 = vsel %vm850, 1, 0
      %v883 = vsel %vm851, 1, 0
      %v884 = vsel %vm852, 1, 0
      %v885 = vcvt.s32.f32 %v853
      %v886 = vcvt.s32.f32 %v854
      %v887 = vcvt.s32.f32 %v855
      %v888 = vcvt.s32.f32 %v856
      %v889 = vcvt.s32.f32 %v857
      %v890 = vcvt.s32.f32 %v858
      %v891 = vcvt.s32.f32 %v859
      %v892 = vcvt.s32.f32 %v860
      %v893 = vcvt.s32.f32 %v861
      %v894 = vcvt.s32.f32 %v862
      %v895 = vcvt.s32.f32 %v863
      %v896 = vcvt.s32.f32 %v864
      %v897 = vcvt.s32.f32 %v865
      %v898 = vcvt.s32.f32 %v866
      %v899 = vcvt.s32.f32 %v867
      %v900 = vcvt.s32.f32 %v868
      %v901 = vcvt.s32.f32 %v869
      %v902 = vcvt.s32.f32 %v870
      %v903 = vcvt.s32.f32 %v871
      %v904 = vcvt.s32.f32 %v872
      %v905 = vcvt.s32.f32 %v873
      %v906 = vcvt.s32.f32 %v874
      %v907 = vcvt.s32.f32 %v875
      %v908 = vcvt.s32.f32 %v876
      %v909 = vcvt.s32.f32 %v877
      %v910 = vcvt.s32.f32 %v878
      %v911 = vcvt.s32.f32 %v879
      %v912 = vcvt.s32.f32 %v880
      %v913 = vcvt.s32.f32 %v881
      %v914 = vcvt.s32.f32 %v882
      %v915 = vcvt.s32.f32 %v883
      %v916 = vcvt.s32.f32 %v884
      %v917 = vadd.f32 %v661, %v885
      %v918 = vadd.f32 %v662, %v886
      %v919 = vadd.f32 %v663, %v887
      %v920 = vadd.f32 %v664, %v888
      %v921 = vadd.f32 %v665, %v889
      %v922 = vadd.f32 %v666, %v890
      %v923 = vadd.f32 %v667, %v891
      %v924 = vadd.f32 %v668, %v892
      %v925 = vadd.f32 %v669, %v893
      %v926 = vadd.f32 %v670, %v894
      %v927 = vadd.f32 %v671, %v895
      %v928 = vadd.f32 %v672, %v896
      %v929 = vadd.f32 %v673, %v897
      %v930 = vadd.f32 %v674, %v898
      %v931 = vadd.f32 %v675, %v899
      %v932 = vadd.f32 %v676, %v900
      %v933 = vadd.f32 %v677, %v901
      %v934 = vadd.f32 %v678, %v902
      %v935 = vadd.f32 %v679, %v903
      %v936 = vadd.f32 %v680, %v904
      %v937 = vadd.f32 %v681, %v905
      %v938 = vadd.f32 %v682, %v906
      %v939 = vadd.f32 %v683, %v907
      %v940 = vadd.f32 %v684, %v908
      %v941 = vadd.f32 %v685, %v909
      %v942 = vadd.f32 %v686, %v910
      %v943 = vadd.f32 %v687, %v911
      %v944 = vadd.f32 %v688, %v912
      %v945 = vadd.f32 %v689, %v913
      %v946 = vadd.f32 %v690, %v914
      %v947 = vadd.f32 %v691, %v915
      %v948 = vadd.f32 %v692, %v916
      %v949 = vadd.s32 %v180, 48
      %v950 = vadd.s32 %v182, 48
      %v951 = vadd.s32 %v184, 48
      %v952 = vadd.s32 %v186, 48
      %v953 = vadd.s32 %v188, 48
      %v954 = vadd.s32 %v190, 48
      %v955 = vadd.s32 %v192, 48
      %v956 = vadd.s32 %v194, 48
      %v957 = vadd.s32 %v196, 48
      %v958 = vadd.s32 %v198, 48
      %v959 = vadd.s32 %v200, 48
      %v960 = vadd.s32 %v202, 48
      %v961 = vadd.s32 %v204, 48
      %v962 = vadd.s32 %v206, 48
      %v963 = vadd.s32 %v208, 48
      %v964 = vadd.s32 %v210, 48
      %v965 = vadd.s32 %v212, 48
      %v966 = vadd.s32 %v214, 48
      %v967 = vadd.s32 %v216, 48
      %v968 = vadd.s32 %v218, 48
      %v969 = vadd.s32 %v220, 48
      %v970 = vadd.s32 %v222, 48
      %v971 = vadd.s32 %v224, 48
      %v972 = vadd.s32 %v226, 48
      %v973 = vadd.s32 %v228, 48
      %v974 = vadd.s32 %v230, 48
      %v975 = vadd.s32 %v232, 48
      %v976 = vadd.s32 %v234, 48
      %v977 = vadd.s32 %v236, 48
      %v978 = vadd.s32 %v238, 48
      %v979 = vadd.s32 %v240, 48
      %v980 = vadd.s32 %v242, 48
      %981 = vset.pattern.permute.xlu0 3
      %982 = vperm.xlu0 %981, %v949
      %v983 = vpop.permute.xlu0 %982
      %984 = vset.pattern.permute.xlu0 3
      %985 = vperm.xlu0 %984, %v950
      %v986 = vpop.permute.xlu0 %985
      %987 = vset.pattern.permute.xlu0 3
      %988 = vperm.xlu0 %987, %v951
      %v989 = vpop.permute.xlu0 %988
      %990 = vset.pattern.permute.xlu0 3
      %991 = vperm.xlu0 %990, %v952
      %v992 = vpop.permute.xlu0 %991
      %993 = vset.pattern.permute.xlu0 3
      %994 = vperm.xlu0 %993, %v953
      %v995 = vpop.permute.xlu0 %994
      %996 = vset.pattern.permute.xlu0 3
      %997 = vperm.xlu0 %996, %v954
      %v998 = vpop.permute.xlu0 %997
      %999 = vset.pattern.permute.xlu0 3
      %1000 = vperm.xlu0 %999, %v955
      %v1001 = vpop.permute.xlu0 %1000
      %1002 = vset.pattern.permute.xlu0 3
      %1003 = vperm.xlu0 %1002, %v956
      %v1004 = vpop.permute.xlu0 %1003
      %1005 = vset.pattern.permute.xlu0 3
      %1006 = vperm.xlu0 %1005, %v957
      %v1007 = vpop.permute.xlu0 %1006
      %1008 = vset.pattern.permute.xlu0 3
      %1009 = vperm.xlu0 %1008, %v958
      %v1010 = vpop.permute.xlu0 %1009
      %1011 = vset.pattern.permute.xlu0 3
      %1012 = vperm.xlu0 %1011, %v959
      %v1013 = vpop.permute.xlu0 %1012
      %1014 = vset.pattern.permute.xlu0 3
      %1015 = vperm.xlu0 %1014, %v960
      %v1016 = vpop.permute.xlu0 %1015
      %1017 = vset.pattern.permute.xlu0 3
      %1018 = vperm.xlu0 %1017, %v961
      %v1019 = vpop.permute.xlu0 %1018
      %1020 = vset.pattern.permute.xlu0 3
      %1021 = vperm.xlu0 %1020, %v962
      %v1022 = vpop.permute.xlu0 %1021
      %1023 = vset.pattern.permute.xlu0 3
      %1024 = vperm.xlu0 %1023, %v963
      %v1025 = vpop.permute.xlu0 %1024
      %1026 = vset.pattern.permute.xlu0 3
      %1027 = vperm.xlu0 %1026, %v964
      %v1028 = vpop.permute.xlu0 %1027
      %1029 = vset.pattern.permute.xlu0 3
      %1030 = vperm.xlu0 %1029, %v965
      %v1031 = vpop.permute.xlu0 %1030
      %1032 = vset.pattern.permute.xlu0 3
      %1033 = vperm.xlu0 %1032, %v966
      %v1034 = vpop.permute.xlu0 %1033
      %1035 = vset.pattern.permute.xlu0 3
      %1036 = vperm.xlu0 %1035, %v967
      %v1037 = vpop.permute.xlu0 %1036
      %1038 = vset.pattern.permute.xlu0 3
      %1039 = vperm.xlu0 %1038, %v968
      %v1040 = vpop.permute.xlu0 %1039
      %1041 = vset.pattern.permute.xlu0 3
      %1042 = vperm.xlu0 %1041, %v969
      %v1043 = vpop.permute.xlu0 %1042
      %1044 = vset.pattern.permute.xlu0 3
      %1045 = vperm.xlu0 %1044, %v970
      %v1046 = vpop.permute.xlu0 %1045
      %1047 = vset.pattern.permute.xlu0 3
      %1048 = vperm.xlu0 %1047, %v971
      %v1049 = vpop.permute.xlu0 %1048
      %1050 = vset.pattern.permute.xlu0 3
      %1051 = vperm.xlu0 %1050, %v972
      %v1052 = vpop.permute.xlu0 %1051
      %1053 = vset.pattern.permute.xlu0 3
      %1054 = vperm.xlu0 %1053, %v973
      %v1055 = vpop.permute.xlu0 %1054
      %1056 = vset.pattern.permute.xlu0 3
      %1057 = vperm.xlu0 %1056, %v974
      %v1058 = vpop.permute.xlu0 %1057
      %1059 = vset.pattern.permute.xlu0 3
      %1060 = vperm.xlu0 %1059, %v975
      %v1061 = vpop.permute.xlu0 %1060
      %1062 = vset.pattern.permute.xlu0 3
      %1063 = vperm.xlu0 %1062, %v976
      %v1064 = vpop.permute.xlu0 %1063
      %1065 = vset.pattern.permute.xlu0 3
      %1066 = vperm.xlu0 %1065, %v977
      %v1067 = vpop.permute.xlu0 %1066
      %1068 = vset.pattern.permute.xlu0 3
      %1069 = vperm.xlu0 %1068, %v978
      %v1070 = vpop.permute.xlu0 %1069
      %1071 = vset.pattern.permute.xlu0 3
      %1072 = vperm.xlu0 %1071, %v979
      %v1073 = vpop.permute.xlu0 %1072
      %1074 = vset.pattern.permute.xlu0 3
      %1075 = vperm.xlu0 %1074, %v980
      %v1076 = vpop.permute.xlu0 %1075
      %vm1077 = vcmp.eq.s32.totalorder %v244, %v983
      %vm1078 = vcmp.eq.s32.totalorder %v244, %v986
      %vm1079 = vcmp.eq.s32.totalorder %v244, %v989
      %vm1080 = vcmp.eq.s32.totalorder %v244, %v992
      %vm1081 = vcmp.eq.s32.totalorder %v244, %v995
      %vm1082 = vcmp.eq.s32.totalorder %v244, %v998
      %vm1083 = vcmp.eq.s32.totalorder %v244, %v1001
      %vm1084 = vcmp.eq.s32.totalorder %v244, %v1004
      %vm1085 = vcmp.eq.s32.totalorder %v244, %v1007
      %vm1086 = vcmp.eq.s32.totalorder %v244, %v1010
      %vm1087 = vcmp.eq.s32.totalorder %v244, %v1013
      %vm1088 = vcmp.eq.s32.totalorder %v244, %v1016
      %vm1089 = vcmp.eq.s32.totalorder %v244, %v1019
      %vm1090 = vcmp.eq.s32.totalorder %v244, %v1022
      %vm1091 = vcmp.eq.s32.totalorder %v244, %v1025
      %vm1092 = vcmp.eq.s32.totalorder %v244, %v1028
      %vm1093 = vcmp.eq.s32.totalorder %v244, %v1031
      %vm1094 = vcmp.eq.s32.totalorder %v244, %v1034
      %vm1095 = vcmp.eq.s32.totalorder %v244, %v1037
      %vm1096 = vcmp.eq.s32.totalorder %v244, %v1040
      %vm1097 = vcmp.eq.s32.totalorder %v244, %v1043
      %vm1098 = vcmp.eq.s32.totalorder %v244, %v1046
      %vm1099 = vcmp.eq.s32.totalorder %v244, %v1049
      %vm1100 = vcmp.eq.s32.totalorder %v244, %v1052
      %vm1101 = vcmp.eq.s32.totalorder %v244, %v1055
      %vm1102 = vcmp.eq.s32.totalorder %v244, %v1058
      %vm1103 = vcmp.eq.s32.totalorder %v244, %v1061
      %vm1104 = vcmp.eq.s32.totalorder %v244, %v1064
      %vm1105 = vcmp.eq.s32.totalorder %v244, %v1067
      %vm1106 = vcmp.eq.s32.totalorder %v244, %v1070
      %vm1107 = vcmp.eq.s32.totalorder %v244, %v1073
      %vm1108 = vcmp.eq.s32.totalorder %v244, %v1076
      %v1109 = vsel %vm1077, 1, 0
      %v1110 = vsel %vm1078, 1, 0
      %v1111 = vsel %vm1079, 1, 0
      %v1112 = vsel %vm1080, 1, 0
      %v1113 = vsel %vm1081, 1, 0
      %v1114 = vsel %vm1082, 1, 0
      %v1115 = vsel %vm1083, 1, 0
      %v1116 = vsel %vm1084, 1, 0
      %v1117 = vsel %vm1085, 1, 0
      %v1118 = vsel %vm1086, 1, 0
      %v1119 = vsel %vm1087, 1, 0
      %v1120 = vsel %vm1088, 1, 0
      %v1121 = vsel %vm1089, 1, 0
      %v1122 = vsel %vm1090, 1, 0
      %v1123 = vsel %vm1091, 1, 0
      %v1124 = vsel %vm1092, 1, 0
      %v1125 = vsel %vm1093, 1, 0
      %v1126 = vsel %vm1094, 1, 0
      %v1127 = vsel %vm1095, 1, 0
      %v1128 = vsel %vm1096, 1, 0
      %v1129 = vsel %vm1097, 1, 0
      %v1130 = vsel %vm1098, 1, 0
      %v1131 = vsel %vm1099, 1, 0
      %v1132 = vsel %vm1100, 1, 0
      %v1133 = vsel %vm1101, 1, 0
      %v1134 = vsel %vm1102, 1, 0
      %v1135 = vsel %vm1103, 1, 0
      %v1136 = vsel %vm1104, 1, 0
      %v1137 = vsel %vm1105, 1, 0
      %v1138 = vsel %vm1106, 1, 0
      %v1139 = vsel %vm1107, 1, 0
      %v1140 = vsel %vm1108, 1, 0
      %v1141 = vcvt.s32.f32 %v1109
      %v1142 = vcvt.s32.f32 %v1110
      %v1143 = vcvt.s32.f32 %v1111
      %v1144 = vcvt.s32.f32 %v1112
      %v1145 = vcvt.s32.f32 %v1113
      %v1146 = vcvt.s32.f32 %v1114
      %v1147 = vcvt.s32.f32 %v1115
      %v1148 = vcvt.s32.f32 %v1116
      %v1149 = vcvt.s32.f32 %v1117
      %v1150 = vcvt.s32.f32 %v1118
      %v1151 = vcvt.s32.f32 %v1119
      %v1152 = vcvt.s32.f32 %v1120
      %v1153 = vcvt.s32.f32 %v1121
      %v1154 = vcvt.s32.f32 %v1122
      %v1155 = vcvt.s32.f32 %v1123
      %v1156 = vcvt.s32.f32 %v1124
      %v1157 = vcvt.s32.f32 %v1125
      %v1158 = vcvt.s32.f32 %v1126
      %v1159 = vcvt.s32.f32 %v1127
      %v1160 = vcvt.s32.f32 %v1128
      %v1161 = vcvt.s32.f32 %v1129
      %v1162 = vcvt.s32.f32 %v1130
      %v1163 = vcvt.s32.f32 %v1131
      %v1164 = vcvt.s32.f32 %v1132
      %v1165 = vcvt.s32.f32 %v1133
      %v1166 = vcvt.s32.f32 %v1134
      %v1167 = vcvt.s32.f32 %v1135
      %v1168 = vcvt.s32.f32 %v1136
      %v1169 = vcvt.s32.f32 %v1137
      %v1170 = vcvt.s32.f32 %v1138
      %v1171 = vcvt.s32.f32 %v1139
      %v1172 = vcvt.s32.f32 %v1140
      %v1173 = vadd.f32 %v917, %v1141
      %v1174 = vadd.f32 %v918, %v1142
      %v1175 = vadd.f32 %v919, %v1143
      %v1176 = vadd.f32 %v920, %v1144
      %v1177 = vadd.f32 %v921, %v1145
      %v1178 = vadd.f32 %v922, %v1146
      %v1179 = vadd.f32 %v923, %v1147
      %v1180 = vadd.f32 %v924, %v1148
      %v1181 = vadd.f32 %v925, %v1149
      %v1182 = vadd.f32 %v926, %v1150
      %v1183 = vadd.f32 %v927, %v1151
      %v1184 = vadd.f32 %v928, %v1152
      %v1185 = vadd.f32 %v929, %v1153
      %v1186 = vadd.f32 %v930, %v1154
      %v1187 = vadd.f32 %v931, %v1155
      %v1188 = vadd.f32 %v932, %v1156
      %v1189 = vadd.f32 %v933, %v1157
      %v1190 = vadd.f32 %v934, %v1158
      %v1191 = vadd.f32 %v935, %v1159
      %v1192 = vadd.f32 %v936, %v1160
      %v1193 = vadd.f32 %v937, %v1161
      %v1194 = vadd.f32 %v938, %v1162
      %v1195 = vadd.f32 %v939, %v1163
      %v1196 = vadd.f32 %v940, %v1164
      %v1197 = vadd.f32 %v941, %v1165
      %v1198 = vadd.f32 %v942, %v1166
      %v1199 = vadd.f32 %v943, %v1167
      %v1200 = vadd.f32 %v944, %v1168
      %v1201 = vadd.f32 %v945, %v1169
      %v1202 = vadd.f32 %v946, %v1170
      %v1203 = vadd.f32 %v947, %v1171
      %v1204 = vadd.f32 %v948, %v1172
      %v1205 = vld [vmem:[%s1] sm:$0xff]
      %v1206 = vld [vmem:[%s1 + $0x8] sm:$0xff]
      %v1207 = vld [vmem:[%s1 + $0x10] sm:$0xff]
      %v1208 = vld [vmem:[%s1 + $0x18] sm:$0xff]
      %v1209 = vld [vmem:[%s1 + $0x20] sm:$0xff]
      %v1210 = vld [vmem:[%s1 + $0x28] sm:$0xff]
      %v1211 = vld [vmem:[%s1 + $0x30] sm:$0xff]
      %v1212 = vld [vmem:[%s1 + $0x38] sm:$0xff]
      %vm1213 = vcmask 523264
      %v1215 = vsel %vm1213, %v1173, 0
      %v1218 = vsel %vm1213, %v1174, 0
      %v1221 = vsel %vm1213, %v1175, 0
      %v1224 = vsel %vm1213, %v1176, 0
      %v1227 = vsel %vm1213, %v1177, 0
      %v1230 = vsel %vm1213, %v1178, 0
      %v1233 = vsel %vm1213, %v1179, 0
      %v1236 = vsel %vm1213, %v1180, 0
      %v1239 = vsel %vm1213, %v1181, 0
      %v1242 = vsel %vm1213, %v1182, 0
      %v1245 = vsel %vm1213, %v1183, 0
      %v1248 = vsel %vm1213, %v1184, 0
      %v1251 = vsel %vm1213, %v1185, 0
      %v1254 = vsel %vm1213, %v1186, 0
      %v1257 = vsel %vm1213, %v1187, 0
      %v1260 = vsel %vm1213, %v1188, 0
      %v1263 = vsel %vm1213, %v1189, 0
      %v1266 = vsel %vm1213, %v1190, 0
      %v1269 = vsel %vm1213, %v1191, 0
      %v1272 = vsel %vm1213, %v1192, 0
      %v1275 = vsel %vm1213, %v1193, 0
      %v1278 = vsel %vm1213, %v1194, 0
      %v1281 = vsel %vm1213, %v1195, 0
      %v1284 = vsel %vm1213, %v1196, 0
      %v1287 = vsel %vm1213, %v1197, 0
      %v1290 = vsel %vm1213, %v1198, 0
      %v1293 = vsel %vm1213, %v1199, 0
      %v1296 = vsel %vm1213, %v1200, 0
      %v1299 = vsel %vm1213, %v1201, 0
      %v1302 = vsel %vm1213, %v1202, 0
      %v1305 = vsel %vm1213, %v1203, 0
      %v1308 = vsel %vm1213, %v1204, 0
      %1310 = vmatprep.subr.mxu0 0.0
      %1311 = vmatpush1.msra.mxu0 %v1205
      %1312 = vmatprep.subr.mxu0 0.0
      %1313 = vmatpush1.msra.mxu0 %v1206
      %1314 = vmatprep.subr.mxu0 0.0
      %1315 = vmatpush1.msra.mxu0 %v1207
      %1316 = vmatprep.subr.mxu0 0.0
      %1317 = vmatpush1.msra.mxu0 %v1208
      %1318 = vmatprep.subr.mxu0 0.0
      %1319 = vmatpush1.msra.mxu0 %v1209
      %1320 = vmatprep.subr.mxu0 0.0
      %1321 = vmatpush1.msra.mxu0 %v1210
      %1322 = vmatprep.subr.mxu0 0.0
      %1323 = vmatpush1.msra.mxu0 %v1211
      %1324 = vmatprep.subr.mxu0 0.0
      %1325 = vmatpush1.msra.mxu0 %v1212
      %1326 = vmatprep.subr.mxu0 0.0
      %1327 = vmatpush1.msra.mxu0 0.0
      %1328 = vmatprep.subr.mxu0 0.0
      %1329 = vmatpush1.msra.mxu0 0.0
      %1330 = vmatprep.subr.mxu0 0.0
      %1331 = vmatpush1.msra.mxu0 0.0
      %1332 = vmatprep.subr.mxu0 0.0
      %1333 = vmatpush1.msra.mxu0 0.0
      %1334 = vmatprep.subr.mxu0 0.0
      %1335 = vmatpush1.msra.mxu0 0.0
      %1336 = vmatprep.subr.mxu0 0.0
      %1337 = vmatpush1.msra.mxu0 0.0
      %1338 = vmatprep.subr.mxu0 0.0
      %1339 = vmatpush1.msra.mxu0 0.0
      %1340 = vmatprep.subr.mxu0 0.0
      %1341 = vmatpush1.msra.mxu0 0.0
      %1342 = vmatprep.subr.mxu0 0.0
      %1343 = vmatpush1.msra.mxu0 0.0
      %1344 = vmatprep.subr.mxu0 0.0
      %1345 = vmatpush1.msra.mxu0 0.0
      %1346 = vmatprep.subr.mxu0 0.0
      %1347 = vmatpush1.msra.mxu0 0.0
      %1348 = vmatprep.subr.mxu0 0.0
      %1349 = vmatpush1.msra.mxu0 0.0
      %1350 = vmatprep.subr.mxu0 0.0
      %1351 = vmatpush1.msra.mxu0 0.0
      %1352 = vmatprep.subr.mxu0 0.0
      %1353 = vmatpush1.msra.mxu0 0.0
      %1354 = vmatprep.subr.mxu0 0.0
      %1355 = vmatpush1.msra.mxu0 0.0
      %1356 = vmatprep.subr.mxu0 0.0
      %1357 = vmatpush1.msra.mxu0 0.0
      %1358 = vmatprep.subr.mxu0 0.0
      %1359 = vmatpush1.msra.mxu0 0.0
      %1360 = vmatprep.subr.mxu0 0.0
      %1361 = vmatpush1.msra.mxu0 0.0
      %1362 = vmatprep.subr.mxu0 0.0
      %1363 = vmatpush1.msra.mxu0 0.0
      %1364 = vmatprep.subr.mxu0 0.0
      %1365 = vmatpush1.msra.mxu0 0.0
      %1366 = vmatprep.subr.mxu0 0.0
      %1367 = vmatpush1.msra.mxu0 0.0
      %1368 = vmatprep.subr.mxu0 0.0
      %1369 = vmatpush1.msra.mxu0 0.0
      %1370 = vmatprep.subr.mxu0 0.0
      %1371 = vmatpush1.msra.mxu0 0.0
      %1372 = vmatprep.subr.mxu0 0.0
      %1373 = vmatpush1.msra.mxu0 0.0
      %1374 = vmatprep.mubr.f32.mxu0 0.0
      %1375 = vmatmul.mubr.f32.gmra.mrb[0].mxu0 %v1215
      %v1376 = vpop.f32.mrb[0].mxu0
      %v1377 = vadd.f32 0.0, %v1376
      %v1378 = vpop.f32.mrb[0].mxu0
      %1379 = vmatprep.mubr.f32.mxu0 0.0
      %1380 = vmatmul.mubr.f32.gmra.mrb[0].mxu0 %v1218
      %v1381 = vpop.f32.mrb[0].mxu0
      %v1382 = vadd.f32 0.0, %v1381
      %v1383 = vpop.f32.mrb[0].mxu0
      %1384 = vmatprep.mubr.f32.mxu0 0.0
      %1385 = vmatmul.mubr.f32.gmra.mrb[0].mxu0 %v1221
      %v1386 = vpop.f32.mrb[0].mxu0
      %v1387 = vadd.f32 0.0, %v1386
      %v1388 = vpop.f32.mrb[0].mxu0
      %1389 = vmatprep.mubr.f32.mxu0 0.0
      %1390 = vmatmul.mubr.f32.gmra.mrb[0].mxu0 %v1224
      %v1391 = vpop.f32.mrb[0].mxu0
      %v1392 = vadd.f32 0.0, %v1391
      %v1393 = vpop.f32.mrb[0].mxu0
      %1394 = vmatprep.mubr.f32.mxu0 0.0
      %1395 = vmatmul.mubr.f32.gmra.mrb[0].mxu0 %v1227
      %v1396 = vpop.f32.mrb[0].mxu0
      %v1397 = vadd.f32 0.0, %v1396
      %v1398 = vpop.f32.mrb[0].mxu0
      %1399 = vmatprep.mubr.f32.mxu0 0.0
      %1400 = vmatmul.mubr.f32.gmra.mrb[0].mxu0 %v1230
      %v1401 = vpop.f32.mrb[0].mxu0
      %v1402 = vadd.f32 0.0, %v1401
      %v1403 = vpop.f32.mrb[0].mxu0
      %1404 = vmatprep.mubr.f32.mxu0 0.0
      %1405 = vmatmul.mubr.f32.gmra.mrb[0].mxu0 %v1233
      %v1406 = vpop.f32.mrb[0].mxu0
      %v1407 = vadd.f32 0.0, %v1406
      %v1408 = vpop.f32.mrb[0].mxu0
      %1409 = vmatprep.mubr.f32.mxu0 0.0
      %1410 = vmatmul.mubr.f32.gmra.mrb[0].mxu0 %v1236
      %v1411 = vpop.f32.mrb[0].mxu0
      %v1412 = vadd.f32 0.0, %v1411
      %v1413 = vpop.f32.mrb[0].mxu0
      %1414 = vmatprep.mubr.f32.mxu0 0.0
      %1415 = vmatmul.mubr.f32.gmra.mrb[0].mxu0 %v1239
      %v1416 = vpop.f32.mrb[0].mxu0
      %v1417 = vadd.f32 0.0, %v1416
      %v1418 = vpop.f32.mrb[0].mxu0
      %1419 = vmatprep.mubr.f32.mxu0 0.0
      %1420 = vmatmul.mubr.f32.gmra.mrb[0].mxu0 %v1242
      %v1421 = vpop.f32.mrb[0].mxu0
      %v1422 = vadd.f32 0.0, %v1421
      %v1423 = vpop.f32.mrb[0].mxu0
      %1424 = vmatprep.mubr.f32.mxu0 0.0
      %1425 = vmatmul.mubr.f32.gmra.mrb[0].mxu0 %v1245
      %v1426 = vpop.f32.mrb[0].mxu0
      %v1427 = vadd.f32 0.0, %v1426
      %v1428 = vpop.f32.mrb[0].mxu0
      %1429 = vmatprep.mubr.f32.mxu0 0.0
      %1430 = vmatmul.mubr.f32.gmra.mrb[0].mxu0 %v1248
      %v1431 = vpop.f32.mrb[0].mxu0
      %v1432 = vadd.f32 0.0, %v1431
      %v1433 = vpop.f32.mrb[0].mxu0
      %1434 = vmatprep.mubr.f32.mxu0 0.0
      %1435 = vmatmul.mubr.f32.gmra.mrb[0].mxu0 %v1251
      %v1436 = vpop.f32.mrb[0].mxu0
      %v1437 = vadd.f32 0.0, %v1436
      %v1438 = vpop.f32.mrb[0].mxu0
      %1439 = vmatprep.mubr.f32.mxu0 0.0
      %1440 = vmatmul.mubr.f32.gmra.mrb[0].mxu0 %v1254
      %v1441 = vpop.f32.mrb[0].mxu0
      %v1442 = vadd.f32 0.0, %v1441
      %v1443 = vpop.f32.mrb[0].mxu0
      %1444 = vmatprep.mubr.f32.mxu0 0.0
      %1445 = vmatmul.mubr.f32.gmra.mrb[0].mxu0 %v1257
      %v1446 = vpop.f32.mrb[0].mxu0
      %v1447 = vadd.f32 0.0, %v1446
      %v1448 = vpop.f32.mrb[0].mxu0
      %1449 = vmatprep.mubr.f32.mxu0 0.0
      %1450 = vmatmul.mubr.f32.gmra.mrb[0].mxu0 %v1260
      %v1451 = vpop.f32.mrb[0].mxu0
      %v1452 = vadd.f32 0.0, %v1451
      %v1453 = vpop.f32.mrb[0].mxu0
      %1454 = vmatprep.mubr.f32.mxu0 0.0
      %1455 = vmatmul.mubr.f32.gmra.mrb[0].mxu0 %v1263
      %v1456 = vpop.f32.mrb[0].mxu0
      %v1457 = vadd.f32 0.0, %v1456
      %v1458 = vpop.f32.mrb[0].mxu0
      %1459 = vmatprep.mubr.f32.mxu0 0.0
      %1460 = vmatmul.mubr.f32.gmra.mrb[0].mxu0 %v1266
      %v1461 = vpop.f32.mrb[0].mxu0
      %v1462 = vadd.f32 0.0, %v1461
      %v1463 = vpop.f32.mrb[0].mxu0
      %1464 = vmatprep.mubr.f32.mxu0 0.0
      %1465 = vmatmul.mubr.f32.gmra.mrb[0].mxu0 %v1269
      %v1466 = vpop.f32.mrb[0].mxu0
      %v1467 = vadd.f32 0.0, %v1466
      %v1468 = vpop.f32.mrb[0].mxu0
      %1469 = vmatprep.mubr.f32.mxu0 0.0
      %1470 = vmatmul.mubr.f32.gmra.mrb[0].mxu0 %v1272
      %v1471 = vpop.f32.mrb[0].mxu0
      %v1472 = vadd.f32 0.0, %v1471
      %v1473 = vpop.f32.mrb[0].mxu0
      %1474 = vmatprep.mubr.f32.mxu0 0.0
      %1475 = vmatmul.mubr.f32.gmra.mrb[0].mxu0 %v1275
      %v1476 = vpop.f32.mrb[0].mxu0
      %v1477 = vadd.f32 0.0, %v1476
      %v1478 = vpop.f32.mrb[0].mxu0
      %1479 = vmatprep.mubr.f32.mxu0 0.0
      %1480 = vmatmul.mubr.f32.gmra.mrb[0].mxu0 %v1278
      %v1481 = vpop.f32.mrb[0].mxu0
      %v1482 = vadd.f32 0.0, %v1481
      %v1483 = vpop.f32.mrb[0].mxu0
      %1484 = vmatprep.mubr.f32.mxu0 0.0
      %1485 = vmatmul.mubr.f32.gmra.mrb[0].mxu0 %v1281
      %v1486 = vpop.f32.mrb[0].mxu0
      %v1487 = vadd.f32 0.0, %v1486
      %v1488 = vpop.f32.mrb[0].mxu0
      %1489 = vmatprep.mubr.f32.mxu0 0.0
      %1490 = vmatmul.mubr.f32.gmra.mrb[0].mxu0 %v1284
      %v1491 = vpop.f32.mrb[0].mxu0
      %v1492 = vadd.f32 0.0, %v1491
      %v1493 = vpop.f32.mrb[0].mxu0
      %1494 = vmatprep.mubr.f32.mxu0 0.0
      %1495 = vmatmul.mubr.f32.gmra.mrb[0].mxu0 %v1287
      %v1496 = vpop.f32.mrb[0].mxu0
      %v1497 = vadd.f32 0.0, %v1496
      %v1498 = vpop.f32.mrb[0].mxu0
      %1499 = vmatprep.mubr.f32.mxu0 0.0
      %1500 = vmatmul.mubr.f32.gmra.mrb[0].mxu0 %v1290
      %v1501 = vpop.f32.mrb[0].mxu0
      %v1502 = vadd.f32 0.0, %v1501
      %v1503 = vpop.f32.mrb[0].mxu0
      %1504 = vmatprep.mubr.f32.mxu0 0.0
      %1505 = vmatmul.mubr.f32.gmra.mrb[0].mxu0 %v1293
      %v1506 = vpop.f32.mrb[0].mxu0
      %v1507 = vadd.f32 0.0, %v1506
      %v1508 = vpop.f32.mrb[0].mxu0
      %1509 = vmatprep.mubr.f32.mxu0 0.0
      %1510 = vmatmul.mubr.f32.gmra.mrb[0].mxu0 %v1296
      %v1511 = vpop.f32.mrb[0].mxu0
      %v1512 = vadd.f32 0.0, %v1511
      %v1513 = vpop.f32.mrb[0].mxu0
      %1514 = vmatprep.mubr.f32.mxu0 0.0
      %1515 = vmatmul.mubr.f32.gmra.mrb[0].mxu0 %v1299
      %v1516 = vpop.f32.mrb[0].mxu0
      %v1517 = vadd.f32 0.0, %v1516
      %v1518 = vpop.f32.mrb[0].mxu0
      %1519 = vmatprep.mubr.f32.mxu0 0.0
      %1520 = vmatmul.mubr.f32.gmra.mrb[0].mxu0 %v1302
      %v1521 = vpop.f32.mrb[0].mxu0
      %v1522 = vadd.f32 0.0, %v1521
      %v1523 = vpop.f32.mrb[0].mxu0
      %1524 = vmatprep.mubr.f32.mxu0 0.0
      %1525 = vmatmul.mubr.f32.gmra.mrb[0].mxu0 %v1305
      %v1526 = vpop.f32.mrb[0].mxu0
      %v1527 = vadd.f32 0.0, %v1526
      %v1528 = vpop.f32.mrb[0].mxu0
      %1529 = vmatprep.mubr.f32.mxu0 0.0
      %1530 = vmatmul.mubr.f32.gmra.mrb[0].mxu0 %v1308
      %v1531 = vpop.f32.mrb[0].mxu0
      %v1532 = vadd.f32 0.0, %v1531
      %v1533 = vpop.f32.mrb[0].mxu0
      %1534 = vdwg.mxu0
      %1535 = vst [vmem:[%s145] sm:$0xff] %v1377
      %1536 = vst [vmem:[%s145 + $0x8] sm:$0xff] %v1382
      %1537 = vst [vmem:[%s145 + $0x10] sm:$0xff] %v1387
      %1538 = vst [vmem:[%s145 + $0x18] sm:$0xff] %v1392
      %1539 = vst [vmem:[%s145 + $0x20] sm:$0xff] %v1397
      %1540 = vst [vmem:[%s145 + $0x28] sm:$0xff] %v1402
      %1541 = vst [vmem:[%s145 + $0x30] sm:$0xff] %v1407
      %1542 = vst [vmem:[%s145 + $0x38] sm:$0xff] %v1412
      %1543 = vst [vmem:[%s145 + $0x40] sm:$0xff] %v1417
      %1544 = vst [vmem:[%s145 + $0x48] sm:$0xff] %v1422
      %1545 = vst [vmem:[%s145 + $0x50] sm:$0xff] %v1427
      %1546 = vst [vmem:[%s145 + $0x58] sm:$0xff] %v1432
      %1547 = vst [vmem:[%s145 + $0x60] sm:$0xff] %v1437
      %1548 = vst [vmem:[%s145 + $0x68] sm:$0xff] %v1442
      %1549 = vst [vmem:[%s145 + $0x70] sm:$0xff] %v1447
      %1550 = vst [vmem:[%s145 + $0x78] sm:$0xff] %v1452
      %1551 = vst [vmem:[%s145 + $0x80] sm:$0xff] %v1457
      %1552 = vst [vmem:[%s145 + $0x88] sm:$0xff] %v1462
      %1553 = vst [vmem:[%s145 + $0x90] sm:$0xff] %v1467
      %1554 = vst [vmem:[%s145 + $0x98] sm:$0xff] %v1472
      %1555 = vst [vmem:[%s145 + $0xa0] sm:$0xff] %v1477
      %1556 = vst [vmem:[%s145 + $0xa8] sm:$0xff] %v1482
      %1557 = vst [vmem:[%s145 + $0xb0] sm:$0xff] %v1487
      %1558 = vst [vmem:[%s145 + $0xb8] sm:$0xff] %v1492
      %1559 = vst [vmem:[%s145 + $0xc0] sm:$0xff] %v1497
      %1560 = vst [vmem:[%s145 + $0xc8] sm:$0xff] %v1502
      %1561 = vst [vmem:[%s145 + $0xd0] sm:$0xff] %v1507
      %1562 = vst [vmem:[%s145 + $0xd8] sm:$0xff] %v1512
      %1563 = vst [vmem:[%s145 + $0xe0] sm:$0xff] %v1517
      %1564 = vst [vmem:[%s145 + $0xe8] sm:$0xff] %v1522
      %1565 = vst [vmem:[%s145 + $0xf0] sm:$0xff] %v1527
      %1566 = vst [vmem:[%s145 + $0xf8] sm:$0xff] %v1532
      %s1567 = smul.u32 32, %s13
      %p1568 = scmp.lt.s32.totalorder %s1567, 63
      %s1569 = scalar_select %p1568, %s1567, 63
      %s1570 = smul.addr %s1569, 8
      %s1571 = scalar_lea.vmem %s2, %s1570
      // Predicated region
      $region29: #{learnable_positional_embedding.1} parent=27 // pred_check
        %p1572 = pneg %p78
      $region30: #{learnable_positional_embedding.1} parent=27 // pred_check_branch
        %1574 = sbr.rel (%p1572) target = $region32
      $region31: #{learnable_positional_embedding.1} parent=27 // pred_region
        %s1575 = smul.u32 32, %s13
      $region32: #{learnable_positional_embedding.1} parent=27 // pred_fallthru
        _
    $region28: #{learnable_positional_embedding.1} parent=5 // pred_fallthru
      _
    %p1576 = scmp.le.s32.totalorder 2, %s8
    // Predicated region
    $region33: #{learnable_positional_embedding.1} parent=5 // pred_check
      %p1577 = pneg %p1576
    $region34: #{learnable_positional_embedding.1} parent=5 // pred_check_branch
      %1579 = sbr.rel (%p1577) target = $region36
    $region35: #{learnable_positional_embedding.1} parent=5 // pred_region
      %s1580 = ssub.s32 %s8, 2
      // Predicated region
      $region37: #{learnable_positional_embedding.1} parent=35 // pred_check
        %p1581 = pneg %p84
      $region38: #{learnable_positional_embedding.1} parent=35 // pred_check_branch
        %1583 = sbr.rel (%p1581) target = $region40
      $region39: #{learnable_positional_embedding.1} parent=35 // pred_region
        %s1584 = smul.u32 32, %s14
        %p1585 = scmp.lt.s32.totalorder %s1584, 63
        %s1586 = scalar_select %p1585, %s1584, 63
        %s1587 = smul.addr %s1586, 8
        %s1588 = scalar_lea.vmem %s2, %s1587
      $region40: #{learnable_positional_embedding.1} parent=35 // pred_fallthru
        _
    $region36: #{learnable_positional_embedding.1} parent=5 // pred_fallthru
      _
  $region6: #{learnable_positional_embedding.1} parent=0 // loop_footer
    %s12 = sadd.s32 1, %s8
  $region7: #{learnable_positional_embedding.1} parent=0 // loop_footer_branch
    %7 = sbr.rel target = $region3
  $region8: #{learnable_positional_embedding.1} parent=0 // loop_exit
    _

</llo_original>
